<compile_context>
chip_gen: v7x
topology: tpu7x:2x2x1
jax: 0.10.0
libtpu: 0.0.40
codegen_flags: <defaults>
</compile_context>

<pallas_src>
import functools

import jax
import jax.numpy as jnp
from jax import lax
from jax.experimental import pallas as pl
from jax.experimental.pallas import tpu as pltpu


def _round_up(n: int, m: int) -> int:
    return ((n + m - 1) // m) * m


def _mlp_kernel(x_ref, w1_ref, w2_ref, consts_ref, b3_ref, o_ref):
    """Fused 3-layer MLP forward, feature-major compute.

    Shapes (hid_p = hidden padded to 128, bb = batch tile on the lane axis):
      x_ref      : (bb, in_size)    f32   natural batch-major input tile
      w1_ref     : (hid_p, in_size) bf16  PyTorch (out, in) layout, hid zero-padded
      w2_ref     : (hid_p, hid_p)   bf16
      consts_ref : (hid_p, 3)       f32   columns = [b1, b2, w3-head]
      b3_ref     : (1, 1)           f32
      o_ref      : (1, bb)          f32   lane-dense output row
    """
    x = x_ref[...].astype(w1_ref.dtype)          # f32 -> bf16 cast on the VPU
    b1 = consts_ref[:, 0:1]
    b2 = consts_ref[:, 1:2]
    w3 = consts_ref[:, 2:3]

    # Layer 1: contract W1's in_size against x's in_size -> (hid_p, bb).
    # Transposed RHS is handled by the MXU (same pattern as q @ k^T);
    # accumulation stays f32.
    h = lax.dot_general(w1_ref[...], x,
                        dimension_numbers=(((1,), (1,)), ((), ())),
                        preferred_element_type=jnp.float32)
    h = jnp.maximum(h + b1, 0.0)

    # Layer 2: plain (hid_p, hid_p) @ (hid_p, bb); re-cast activations to bf16
    # for the MXU, keep f32 accumulation and f32 bias/ReLU on the VPU.
    h = jnp.dot(w2_ref[...], h.astype(w2_ref.dtype),
                preferred_element_type=jnp.float32)
    h = jnp.maximum(h + b2, 0.0)

    # Output head (out_features == 1): VPU multiply + XLU sublane reduction,
    # kept off the MXU; result is a lane-dense (1, bb) row -> unmasked store.
    y = jnp.sum(h * w3, axis=0, keepdims=True) + b3_ref[...]
    o_ref[...] = y.astype(o_ref.dtype)


def pack_params(params):
    """One-time packing of PyTorch-layout weights into kernel-ready buffers.

    Runs OFF the per-call hot path: the forward takes the packed pytree and
    never re-pads / re-casts the weights again.
    """
    w1, b1 = params["w1"], params["b1"]
    w2, b2 = params["w2"], params["b2"]
    w3, b3 = params["w3"], params["b3"]
    hid, in_size = w1.shape
    assert w3.shape[0] == 1, "kernel specializes the head to output_size == 1"
    hid_p = _round_up(hid, 128)
    # NOTE: v6e/v7x have a 256x256 MXU; padding hid to 256 only matters if the
    # kernel ever becomes MXU-bound (large hidden/batch) — irrelevant here.
    bf16 = jnp.bfloat16
    w1p = jnp.zeros((hid_p, in_size), bf16).at[:hid, :].set(w1.astype(bf16))
    w2p = jnp.zeros((hid_p, hid_p), bf16).at[:hid, :hid].set(w2.astype(bf16))
    consts = (jnp.zeros((hid_p, 3), jnp.float32)
              .at[:hid, 0].set(b1.astype(jnp.float32))
              .at[:hid, 1].set(b2.astype(jnp.float32))
              .at[:hid, 2].set(w3[0].astype(jnp.float32)))
    b3p = jnp.asarray(b3, jnp.float32).reshape(1, 1)
    return {"w1": w1p, "w2": w2p, "consts": consts, "b3": b3p}


@functools.partial(jax.jit, static_argnames=("block_b", "single_buffer_weights"))
def regression_forward(x, packed, block_b=512, single_buffer_weights=True):
    """Forward pass. x: (B, input_size) f32; packed: output of pack_params.
    Returns (B, 1) f32."""
    w1p, w2p = packed["w1"], packed["w2"]
    consts, b3p = packed["consts"], packed["b3"]

    B, in_size = x.shape
    hid_p = w1p.shape[0]
    assert w1p.shape[1] == in_size

    # --- batch tiling --------------------------------------------------------
    # Big lane-aligned tiles amortize the ~0.35 us/step pipeline overhead, but
    # keep >= target_steps grid steps when B allows so each v7x TensorCore gets
    # >= 2 iterations and can hide the x-tile DMA behind compute.
    target_steps = 4
    bb = max(128, min(_round_up(block_b, 128),
                      _round_up(-(-B // target_steps), 128)))
    Bp = _round_up(B, bb)
    grid = (Bp // bb,)
    # Pad the batch only when it is not already a tile multiple (no-op here).
    xp = x if Bp == B else jnp.zeros((Bp, in_size), x.dtype).at[:B, :].set(x)

    # --- per-generation VMEM budget -------------------------------------------
    try:
        vmem_cap = int(pltpu.get_tpu_info().vmem_capacity_bytes)
    except Exception:  # conservative fallback = v7x per-TC VMEM
        vmem_cap = 64 << 20
    wb = 1 if single_buffer_weights else 2
    vmem_need = (
        2 * bb * in_size * 4                           # x tile (f32, double-buffered)
        + 2 * bb * 4                                   # (1, bb) output row (double-buffered)
        + wb * (hid_p * in_size + hid_p * hid_p) * 2   # bf16 weights (resident)
        + wb * (hid_p * 128 + 128) * 4                 # packed f32 consts (lane-padded) + b3
        + 4 * hid_p * bb * 4                           # f32 activation temporaries
    )
    vmem_limit = int(min(max(2 * vmem_need, 8 << 20), int(0.85 * vmem_cap)))
    # TODO(synk): for hid_p >= ~4096 on v7x (bf16 W2 ~32 MiB), add a K-tiling
    # grid axis over the hidden dim ("arbitrary", last) with an f32 accumulator
    # scratch and pl.when init/finalize instead of keeping W2 fully resident.

    def const_spec(shape):
        # Constant-index blocks never change across grid steps: single-buffer
        # them to halve resident-weight VMEM.
        if single_buffer_weights:
            return pl.BlockSpec(shape, lambda i: (0, 0),
                                pipeline_mode=pl.Buffered(1))
        return pl.BlockSpec(shape, lambda i: (0, 0))

    yt = pl.pallas_call(
        _mlp_kernel,
        out_shape=jax.ShapeDtypeStruct((1, Bp), jnp.float32),
        grid=grid,
        in_specs=[
            pl.BlockSpec((bb, in_size), lambda i: (i, 0)),   # streamed x tile
            const_spec((hid_p, in_size)),                    # W1 (resident)
            const_spec((hid_p, hid_p)),                      # W2 (resident)
            const_spec((hid_p, 3)),                          # [b1 | b2 | w3-head]
            const_spec((1, 1)),                              # b3
        ],
        out_specs=pl.BlockSpec((1, bb), lambda i: (0, i)),   # lane-dense output
        compiler_params=pltpu.CompilerParams(
            dimension_semantics=("parallel",),
            vmem_limit_bytes=vmem_limit,
        ),
    )(xp, w1p, w2p, consts, b3p)

    # Back to the PyTorch-facing (B, 1) layout; drop any batch padding.
    return yt[0, :B].reshape(B, 1)


def run_forward(x, packed, block_b=512):
    """Call the kernel; fall back to default (double-buffered) weight specs if
    this JAX build rejects pipeline_mode=pl.Buffered(1)."""
    try:
        return jax.block_until_ready(
            regression_forward(x, packed, block_b=block_b,
                               single_buffer_weights=True))
    except Exception:
        return jax.block_until_ready(
            regression_forward(x, packed, block_b=block_b,
                               single_buffer_weights=False))


def init_params(key, input_size, hidden_size, output_size=1):
    """PyTorch-style nn.Linear init: U(-1/sqrt(fan_in), 1/sqrt(fan_in)),
    weights in PyTorch (out_features, in_features) layout."""
    def linear(k, fan_in, fan_out):
        kw, kb = jax.random.split(k)
        bound = 1.0 / jnp.sqrt(jnp.float32(fan_in))
        w = jax.random.uniform(kw, (fan_out, fan_in), jnp.float32, -bound, bound)
        b = jax.random.uniform(kb, (fan_out,), jnp.float32, -bound, bound)
        return w, b

    k1, k2, k3 = jax.random.split(key, 3)
    w1, b1 = linear(k1, input_size, hidden_size)
    w2, b2 = linear(k2, hidden_size, hidden_size)
    w3, b3 = linear(k3, hidden_size, output_size)
    return {"w1": w1, "b1": b1, "w2": w2, "b2": b2, "w3": w3, "b3": b3}


def _reference(x, p):
    """Pure-JAX f32 reference matching the PyTorch module semantics."""
    h = jnp.maximum(x @ p["w1"].T + p["b1"], 0.0)
    h = jnp.maximum(h @ p["w2"].T + p["b2"], 0.0)
    return h @ p["w3"].T + p["b3"]


if __name__ == "__main__":
    key = jax.random.PRNGKey(0)
    k_params, k_x = jax.random.split(key)

    batch, input_size, hidden_size, output_size = 512, 32, 32, 1
    params = init_params(k_params, input_size, hidden_size, output_size)
    x = jax.random.normal(k_x, (batch, input_size), jnp.float32)

    # One-time weight packing (off the per-call hot path).
    packed = jax.block_until_ready(pack_params(params))

    # block_b=512 with B=512 -> bb=128, grid=(4,): >= 2 pipelined steps per
    # v7x TensorCore; larger batches keep the full 512-lane tile.
    y = run_forward(x, packed, block_b=512)

    y_ref = _reference(x, params)
    assert y.shape == (batch, output_size)
    # bf16 MXU operands with f32 accumulation vs the f32 reference.
    assert jnp.allclose(y, y_ref, atol=2e-2, rtol=2e-2), (
        "mismatch vs pure-JAX reference: max abs err = "
        f"{float(jnp.max(jnp.abs(y - y_ref)))}")

    print("KERNEL_OK")
</pallas_src>

<mosaic_0001>
module attributes {stable_mosaic.version = 11 : i64} {
  func.func @_mlp_kernel(%arg0: i32, %arg1: memref<128x32xf32, #tpu.memory_space<vmem>>, %arg2: memref<128x32xbf16, #tpu.memory_space<vmem>>, %arg3: memref<128x128xbf16, #tpu.memory_space<vmem>>, %arg4: memref<128x3xf32, #tpu.memory_space<vmem>>, %arg5: memref<1x1xf32, #tpu.memory_space<vmem>>, %arg6: memref<1x128xf32, #tpu.memory_space<vmem>>) attributes {dimension_semantics = [#tpu.dimension_semantics<parallel>], iteration_bounds = array<i64: 4>, scalar_prefetch = 0 : i64, scratch_operands = 0 : i64, tpu.core_type = #tpu.core_type<tc>, window_params = [{transform_indices = @transform_0, window_bounds = array<i64: 128, 32>}, {pipeline_mode = #tpu.pipeline_mode<synchronous>, transform_indices = @transform_1, window_bounds = array<i64: 128, 32>}, {pipeline_mode = #tpu.pipeline_mode<synchronous>, transform_indices = @transform_2, window_bounds = array<i64: 128, 128>}, {pipeline_mode = #tpu.pipeline_mode<synchronous>, transform_indices = @transform_3, window_bounds = array<i64: 128, 3>}, {pipeline_mode = #tpu.pipeline_mode<synchronous>, transform_indices = @transform_4, window_bounds = array<i64: 1, 1>}, {transform_indices = @transform_5, window_bounds = array<i64: 1, 128>}]} {
    %c0 = arith.constant 0 : index
    %c0_0 = arith.constant 0 : index
    %0 = vector.load %arg1[%c0, %c0_0] : memref<128x32xf32, #tpu.memory_space<vmem>>, vector<128x32xf32>
    %1 = arith.truncf %0 : vector<128x32xf32> to vector<128x32xbf16>
    %c0_1 = arith.constant 0 : index
    %c0_2 = arith.constant 0 : index
    %2 = vector.load %arg4[%c0_1, %c0_2] : memref<128x3xf32, #tpu.memory_space<vmem>>, vector<128x1xf32>
    %c0_3 = arith.constant 0 : index
    %c1 = arith.constant 1 : index
    %3 = vector.load %arg4[%c0_3, %c1] : memref<128x3xf32, #tpu.memory_space<vmem>>, vector<128x1xf32>
    %c0_4 = arith.constant 0 : index
    %c2 = arith.constant 2 : index
    %4 = vector.load %arg4[%c0_4, %c2] : memref<128x3xf32, #tpu.memory_space<vmem>>, vector<128x1xf32>
    %c0_5 = arith.constant 0 : index
    %c0_6 = arith.constant 0 : index
    %5 = vector.load %arg2[%c0_5, %c0_6] : memref<128x32xbf16, #tpu.memory_space<vmem>>, vector<128x32xbf16>
    %cst = arith.constant dense<0.000000e+00> : vector<128x128xf32>
    %6 = tpu.matmul %5, %1, %cst {dimension_numbers = #tpu.dot_dimension_numbers<[1], [1], [0], [0], [0, 0, 1, 0], [], []>} : vector<128x32xbf16>, vector<128x32xbf16>, vector<128x128xf32> -> vector<128x128xf32>
    %7 = vector.broadcast %2 : vector<128x1xf32> to vector<128x128xf32>
    %8 = arith.addf %6, %7 : vector<128x128xf32>
    %cst_7 = arith.constant 0.000000e+00 : f32
    %9 = vector.broadcast %cst_7 : f32 to vector<128x128xf32>
    %10 = arith.maximumf %8, %9 : vector<128x128xf32>
    %c0_8 = arith.constant 0 : index
    %c0_9 = arith.constant 0 : index
    %11 = vector.load %arg3[%c0_8, %c0_9] : memref<128x128xbf16, #tpu.memory_space<vmem>>, vector<128x128xbf16>
    %12 = arith.truncf %10 : vector<128x128xf32> to vector<128x128xbf16>
    %cst_10 = arith.constant dense<0.000000e+00> : vector<128x128xf32>
    %13 = tpu.matmul %11, %12, %cst_10 {dimension_numbers = #tpu.dot_dimension_numbers<[1], [0], [0], [1], [0, 0, 1, 1], [], []>} : vector<128x128xbf16>, vector<128x128xbf16>, vector<128x128xf32> -> vector<128x128xf32>
    %14 = vector.broadcast %3 : vector<128x1xf32> to vector<128x128xf32>
    %15 = arith.addf %13, %14 : vector<128x128xf32>
    %cst_11 = arith.constant 0.000000e+00 : f32
    %16 = vector.broadcast %cst_11 : f32 to vector<128x128xf32>
    %17 = arith.maximumf %15, %16 : vector<128x128xf32>
    %18 = vector.broadcast %4 : vector<128x1xf32> to vector<128x128xf32>
    %19 = arith.mulf %17, %18 : vector<128x128xf32>
    %cst_12 = arith.constant dense<0.000000e+00> : vector<128xf32>
    %20 = vector.multi_reduction <add>, %19, %cst_12 [0] : vector<128x128xf32> to vector<128xf32>
    %21 = vector.shape_cast %20 : vector<128xf32> to vector<1x128xf32>
    %c0_13 = arith.constant 0 : index
    %c0_14 = arith.constant 0 : index
    %22 = vector.load %arg5[%c0_13, %c0_14] : memref<1x1xf32, #tpu.memory_space<vmem>>, vector<1x1xf32>
    %23 = vector.broadcast %22 : vector<1x1xf32> to vector<1x128xf32>
    %24 = arith.addf %21, %23 : vector<1x128xf32>
    %c0_15 = arith.constant 0 : index
    %c0_16 = arith.constant 0 : index
    %25 = vector.load %arg6[%c0_15, %c0_16] : memref<1x128xf32, #tpu.memory_space<vmem>>, vector<1x128xf32>
    tpu.vector_store %arg6[%c0_15, %c0_16], %24 {strides = array<i32>} : memref<1x128xf32, #tpu.memory_space<vmem>>, vector<1x128xf32>,
    return
  }
  func.func @transform_0(%arg0: i32) -> (i32, i32) {
    %c0_i32 = arith.constant 0 : i32
    %c0_i32_0 = arith.constant 0 : i32
    return %arg0, %c0_i32 : i32, i32
  }
  func.func @transform_1(%arg0: i32) -> (i32, i32) {
    %c0_i32 = arith.constant 0 : i32
    %c0_i32_0 = arith.constant 0 : i32
    %c0_i32_1 = arith.constant 0 : i32
    return %c0_i32, %c0_i32_0 : i32, i32
  }
  func.func @transform_2(%arg0: i32) -> (i32, i32) {
    %c0_i32 = arith.constant 0 : i32
    %c0_i32_0 = arith.constant 0 : i32
    %c0_i32_1 = arith.constant 0 : i32
    return %c0_i32, %c0_i32_0 : i32, i32
  }
  func.func @transform_3(%arg0: i32) -> (i32, i32) {
    %c0_i32 = arith.constant 0 : i32
    %c0_i32_0 = arith.constant 0 : i32
    %c0_i32_1 = arith.constant 0 : i32
    return %c0_i32, %c0_i32_0 : i32, i32
  }
  func.func @transform_4(%arg0: i32) -> (i32, i32) {
    %c0_i32 = arith.constant 0 : i32
    %c0_i32_0 = arith.constant 0 : i32
    %c0_i32_1 = arith.constant 0 : i32
    return %c0_i32, %c0_i32_0 : i32, i32
  }
  func.func @transform_5(%arg0: i32) -> (i32, i32) {
    %c0_i32 = arith.constant 0 : i32
    %c0_i32_0 = arith.constant 0 : i32
    return %c0_i32, %arg0 : i32, i32
  }
}

module attributes {stable_mosaic.version = 11 : i64} {
  func.func @_mlp_kernel(%arg0: i32, %arg1: memref<128x32xf32, #tpu.memory_space<vmem>>, %arg2: memref<128x32xbf16, #tpu.memory_space<vmem>>, %arg3: memref<128x128xbf16, #tpu.memory_space<vmem>>, %arg4: memref<128x3xf32, #tpu.memory_space<vmem>>, %arg5: memref<1x1xf32, #tpu.memory_space<vmem>>, %arg6: memref<1x128xf32, #tpu.memory_space<vmem>>) attributes {dimension_semantics = [#tpu.dimension_semantics<parallel>], iteration_bounds = array<i64: 4>, scalar_prefetch = 0 : i64, scratch_operands = 0 : i64, tpu.core_type = #tpu.core_type<tc>, window_params = [{transform_indices = @transform_0, window_bounds = array<i64: 128, 32>}, {pipeline_mode = #tpu.pipeline_mode<synchronous>, transform_indices = @transform_1, window_bounds = array<i64: 128, 32>}, {pipeline_mode = #tpu.pipeline_mode<synchronous>, transform_indices = @transform_2, window_bounds = array<i64: 128, 128>}, {pipeline_mode = #tpu.pipeline_mode<synchronous>, transform_indices = @transform_3, window_bounds = array<i64: 128, 3>}, {pipeline_mode = #tpu.pipeline_mode<synchronous>, transform_indices = @transform_4, window_bounds = array<i64: 1, 1>}, {transform_indices = @transform_5, window_bounds = array<i64: 1, 128>}]} {
    %c0 = arith.constant 0 : index
    %c0_0 = arith.constant 0 : index
    %0 = vector.load %arg1[%c0, %c0_0] : memref<128x32xf32, #tpu.memory_space<vmem>>, vector<128x32xf32>
    %1 = arith.truncf %0 : vector<128x32xf32> to vector<128x32xbf16>
    %c0_1 = arith.constant 0 : index
    %c0_2 = arith.constant 0 : index
    %2 = vector.load %arg4[%c0_1, %c0_2] : memref<128x3xf32, #tpu.memory_space<vmem>>, vector<128x1xf32>
    %c0_3 = arith.constant 0 : index
    %c1 = arith.constant 1 : index
    %3 = vector.load %arg4[%c0_3, %c1] : memref<128x3xf32, #tpu.memory_space<vmem>>, vector<128x1xf32>
    %c0_4 = arith.constant 0 : index
    %c2 = arith.constant 2 : index
    %4 = vector.load %arg4[%c0_4, %c2] : memref<128x3xf32, #tpu.memory_space<vmem>>, vector<128x1xf32>
    %c0_5 = arith.constant 0 : index
    %c0_6 = arith.constant 0 : index
    %5 = vector.load %arg2[%c0_5, %c0_6] : memref<128x32xbf16, #tpu.memory_space<vmem>>, vector<128x32xbf16>
    %cst = arith.constant dense<0.000000e+00> : vector<128x128xf32>
    %6 = tpu.matmul %5, %1, %cst {dimension_numbers = #tpu.dot_dimension_numbers<[1], [1], [0], [0], [0, 0, 1, 0], [], []>} : vector<128x32xbf16>, vector<128x32xbf16>, vector<128x128xf32> -> vector<128x128xf32>
    %7 = vector.broadcast %2 : vector<128x1xf32> to vector<128x128xf32>
    %8 = arith.addf %6, %7 : vector<128x128xf32>
    %cst_7 = arith.constant 0.000000e+00 : f32
    %9 = vector.broadcast %cst_7 : f32 to vector<128x128xf32>
    %10 = arith.maximumf %8, %9 : vector<128x128xf32>
    %c0_8 = arith.constant 0 : index
    %c0_9 = arith.constant 0 : index
    %11 = vector.load %arg3[%c0_8, %c0_9] : memref<128x128xbf16, #tpu.memory_space<vmem>>, vector<128x128xbf16>
    %12 = arith.truncf %10 : vector<128x128xf32> to vector<128x128xbf16>
    %cst_10 = arith.constant dense<0.000000e+00> : vector<128x128xf32>
    %13 = tpu.matmul %11, %12, %cst_10 {dimension_numbers = #tpu.dot_dimension_numbers<[1], [0], [0], [1], [0, 0, 1, 1], [], []>} : vector<128x128xbf16>, vector<128x128xbf16>, vector<128x128xf32> -> vector<128x128xf32>
    %14 = vector.broadcast %3 : vector<128x1xf32> to vector<128x128xf32>
    %15 = arith.addf %13, %14 : vector<128x128xf32>
    %cst_11 = arith.constant 0.000000e+00 : f32
    %16 = vector.broadcast %cst_11 : f32 to vector<128x128xf32>
    %17 = arith.maximumf %15, %16 : vector<128x128xf32>
    %18 = vector.broadcast %4 : vector<128x1xf32> to vector<128x128xf32>
    %19 = arith.mulf %17, %18 : vector<128x128xf32>
    %cst_12 = arith.constant dense<0.000000e+00> : vector<128xf32>
    %20 = vector.multi_reduction <add>, %19, %cst_12 [0] : vector<128x128xf32> to vector<128xf32>
    %21 = vector.shape_cast %20 : vector<128xf32> to vector<1x128xf32>
    %c0_13 = arith.constant 0 : index
    %c0_14 = arith.constant 0 : index
    %22 = vector.load %arg5[%c0_13, %c0_14] : memref<1x1xf32, #tpu.memory_space<vmem>>, vector<1x1xf32>
    %23 = vector.broadcast %22 : vector<1x1xf32> to vector<1x128xf32>
    %24 = arith.addf %21, %23 : vector<1x128xf32>
    %c0_15 = arith.constant 0 : index
    %c0_16 = arith.constant 0 : index
    %25 = vector.load %arg6[%c0_15, %c0_16] : memref<1x128xf32, #tpu.memory_space<vmem>>, vector<1x128xf32>
    tpu.vector_store %arg6[%c0_15, %c0_16], %24 {strides = array<i32>} : memref<1x128xf32, #tpu.memory_space<vmem>>, vector<1x128xf32>,
    return
  }
  func.func @transform_0(%arg0: i32) -> (i32, i32) {
    %c0_i32 = arith.constant 0 : i32
    %c0_i32_0 = arith.constant 0 : i32
    return %arg0, %c0_i32 : i32, i32
  }
  func.func @transform_1(%arg0: i32) -> (i32, i32) {
    %c0_i32 = arith.constant 0 : i32
    %c0_i32_0 = arith.constant 0 : i32
    %c0_i32_1 = arith.constant 0 : i32
    return %c0_i32, %c0_i32_0 : i32, i32
  }
  func.func @transform_2(%arg0: i32) -> (i32, i32) {
    %c0_i32 = arith.constant 0 : i32
    %c0_i32_0 = arith.constant 0 : i32
    %c0_i32_1 = arith.constant 0 : i32
    return %c0_i32, %c0_i32_0 : i32, i32
  }
  func.func @transform_3(%arg0: i32) -> (i32, i32) {
    %c0_i32 = arith.constant 0 : i32
    %c0_i32_0 = arith.constant 0 : i32
    %c0_i32_1 = arith.constant 0 : i32
    return %c0_i32, %c0_i32_0 : i32, i32
  }
  func.func @transform_4(%arg0: i32) -> (i32, i32) {
    %c0_i32 = arith.constant 0 : i32
    %c0_i32_0 = arith.constant 0 : i32
    %c0_i32_1 = arith.constant 0 : i32
    return %c0_i32, %c0_i32_0 : i32, i32
  }
  func.func @transform_5(%arg0: i32) -> (i32, i32) {
    %c0_i32 = arith.constant 0 : i32
    %c0_i32_0 = arith.constant 0 : i32
    return %c0_i32, %arg0 : i32, i32
  }
}

</mosaic_0001>

<llo_original>
// kernel: regression_forward.1
$region0: #{regression_forward.1}
  #allocation0 [shape = 'u32[]', space=smem, size = 0x4, offset = 0x4, fixed_abs, tag = 'smem constant byte address 0x4 - core index']
  #allocation1 [shape = 'u32[144,128]{1,0:T(1,128)}', space=vmem, size = 0x12000, scoped, tag = 'internal scratch']
  #allocation2 [shape = 'f32[1,1]{1,0:T(1,128)S(1)}', space=vmem, size = 0x200, scoped, tag = 'scoped memory for regression_forward.1']
  %s0 = inlined_call_operand.vmem [shape: f32[512,32], index: 0, kind: input, shape index: {}]
  %s1 = inlined_call_operand.vmem [shape: bf16[128,32], index: 1, kind: input, shape index: {}]
  %s2 = inlined_call_operand.vmem [shape: bf16[128,128], index: 2, kind: input, shape index: {}]
  %s3 = inlined_call_operand.vmem [shape: f32[128,3], index: 3, kind: input, shape index: {}]
  %s4 = inlined_call_operand.<no memory space> [shape: f32[1,1], index: 4, kind: input, shape index: {}]
  %s5 = inlined_call_operand.hbm [shape: f32[1,512], index: 5, kind: output, shape index: {}]
  %s6 = sld [smem:[#allocation0]]
  $region53: #{regression_forward.1} parent=0
    _
  %s8 = ssub.s32 1, %s6
  %s9 = scalar_select 0, %s8, %s6
  %v10 = vstv %s4
  %11 = vst [vmem:[#allocation2] sm:$0x1] %v10
  $region1: #{regression_forward.1} parent=0
    #allocation3 [shape = 'u8[1024]{0}', space=vmem, size = 0x400, scoped, tag = 'output window, operand 0']
    #allocation4 [shape = 's32[2]{0}', space=sflag, size = 0x8, scoped, tag = 'scoped memory for regression_forward.1']
    %12 = vsyncpa [#allocation4], 0
    %s13 = scalar_lea.sflag [#allocation4], 1
    %14 = vsyncpa %s13, 0
    loop: start=0, step=1, limit=6
    $region2: #{regression_forward.1} parent=1 // loop_pre_header
      _
    $region3: #{regression_forward.1} parent=1 // loop_header
      %s16 = sphi 0, %s20
      %p17 = scmp.ge.s32.totalorder %s16, 6
      %s26 = sphi 0, %s28
      %s29 = sphi 0, %s26
      %s30 = sphi 0, %s29
      %s46 = sphi 0, %s30
      %s50 = sphi 0, %s50
      %s52 = sphi 0, %s50
      %s53 = sphi 0, %s52
      %s67 = sphi 0, %s53
      %s71 = sphi 0, %s71
      %s73 = sphi 0, %s71
      %s74 = sphi 0, %s73
      %s88 = sphi 0, %s74
      %s92 = sphi 0, %s92
      %s94 = sphi 0, %s92
      %s95 = sphi 0, %s94
      %s109 = sphi 0, %s95
      %s113 = sphi 0, %s113
      %s115 = sphi 0, %s113
      %s116 = sphi 0, %s115
      %s130 = sphi 0, %s116
      %s136 = sphi 0, %s138
      %s139 = sphi 0, %s136
      %s140 = sphi 0, %s139
      %s156 = sphi 0, %s140
    $region4: #{regression_forward.1} parent=1 // loop_header_branch
      %19 = sbr.rel (%p17) target = $region8
    $region5: #{regression_forward.1} parent=1 // loop_body
      %s21 = ssub.s32 %s16, 1
      %s22 = ssub.s32 %s16, 2
      %s23 = sadd.s32 %s16, 1
      %s24 = ssub.s32 %s16, %s23
      %p25 = scmp.eq.s32.totalorder %s24, 0
      %s27 = sadd.s32 %s26, 1
      %s28 = scalar_select %p25, %s26, %s27
      %p31 = pneg %p25
      %p32 = scmp.eq.s32.totalorder %s16, 3
      %p33 = por %p31, %p32
      %p34 = scmp.ne.s32.totalorder %s26, %s29
      %p35 = scmp.eq.s32.totalorder %s16, 0
      %p36 = por %p34, %p35
      %p37 = scmp.ne.s32.totalorder %s26, %s29
      %p38 = scmp.eq.s32.totalorder %s21, 3
      %p39 = por %p37, %p38
      %p40 = scmp.ne.s32.totalorder %s29, %s30
      %p41 = scmp.eq.s32.totalorder %s21, 0
      %p42 = por %p40, %p41
      %p43 = scmp.ne.s32.totalorder %s29, %s30
      %p44 = scmp.eq.s32.totalorder %s22, 3
      %p45 = por %p43, %p44
      %p47 = scmp.ne.s32.totalorder %s30, %s46
      %p48 = scmp.eq.s32.totalorder %s22, 0
      %p49 = por %p47, %p48
      %s51 = sadd.s32 %s50, 1
      %p54 = scmp.eq.s32.totalorder %s16, 3
      %p55 = scmp.ne.s32.totalorder %s50, %s52
      %p56 = scmp.eq.s32.totalorder %s16, 0
      %p57 = por %p55, %p56
      %p58 = scmp.ne.s32.totalorder %s50, %s52
      %p59 = scmp.eq.s32.totalorder %s21, 3
      %p60 = por %p58, %p59
      %p61 = scmp.ne.s32.totalorder %s52, %s53
      %p62 = scmp.eq.s32.totalorder %s21, 0
      %p63 = por %p61, %p62
      %p64 = scmp.ne.s32.totalorder %s52, %s53
      %p65 = scmp.eq.s32.totalorder %s22, 3
      %p66 = por %p64, %p65
      %p68 = scmp.ne.s32.totalorder %s53, %s67
      %p69 = scmp.eq.s32.totalorder %s22, 0
      %p70 = por %p68, %p69
      %s72 = sadd.s32 %s71, 1
      %p75 = scmp.eq.s32.totalorder %s16, 3
      %p76 = scmp.ne.s32.totalorder %s71, %s73
      %p77 = scmp.eq.s32.totalorder %s16, 0
      %p78 = por %p76, %p77
      %p79 = scmp.ne.s32.totalorder %s71, %s73
      %p80 = scmp.eq.s32.totalorder %s21, 3
      %p81 = por %p79, %p80
      %p82 = scmp.ne.s32.totalorder %s73, %s74
      %p83 = scmp.eq.s32.totalorder %s21, 0
      %p84 = por %p82, %p83
      %p85 = scmp.ne.s32.totalorder %s73, %s74
      %p86 = scmp.eq.s32.totalorder %s22, 3
      %p87 = por %p85, %p86
      %p89 = scmp.ne.s32.totalorder %s74, %s88
      %p90 = scmp.eq.s32.totalorder %s22, 0
      %p91 = por %p89, %p90
      %s93 = sadd.s32 %s92, 1
      %p96 = scmp.eq.s32.totalorder %s16, 3
      %p97 = scmp.ne.s32.totalorder %s92, %s94
      %p98 = scmp.eq.s32.totalorder %s16, 0
      %p99 = por %p97, %p98
      %p100 = scmp.ne.s32.totalorder %s92, %s94
      %p101 = scmp.eq.s32.totalorder %s21, 3
      %p102 = por %p100, %p101
      %p103 = scmp.ne.s32.totalorder %s94, %s95
      %p104 = scmp.eq.s32.totalorder %s21, 0
      %p105 = por %p103, %p104
      %p106 = scmp.ne.s32.totalorder %s94, %s95
      %p107 = scmp.eq.s32.totalorder %s22, 3
      %p108 = por %p106, %p107
      %p110 = scmp.ne.s32.totalorder %s95, %s109
      %p111 = scmp.eq.s32.totalorder %s22, 0
      %p112 = por %p110, %p111
      %s114 = sadd.s32 %s113, 1
      %p117 = scmp.eq.s32.totalorder %s16, 3
      %p118 = scmp.ne.s32.totalorder %s113, %s115
      %p119 = scmp.eq.s32.totalorder %s16, 0
      %p120 = por %p118, %p119
      %p121 = scmp.ne.s32.totalorder %s113, %s115
      %p122 = scmp.eq.s32.totalorder %s21, 3
      %p123 = por %p121, %p122
      %p124 = scmp.ne.s32.totalorder %s115, %s116
      %p125 = scmp.eq.s32.totalorder %s21, 0
      %p126 = por %p124, %p125
      %p127 = scmp.ne.s32.totalorder %s115, %s116
      %p128 = scmp.eq.s32.totalorder %s22, 3
      %p129 = por %p127, %p128
      %p131 = scmp.ne.s32.totalorder %s116, %s130
      %p132 = scmp.eq.s32.totalorder %s22, 0
      %p133 = por %p131, %p132
      %s134 = ssub.s32 %s16, %s23
      %p135 = scmp.eq.s32.totalorder %s134, 0
      %s137 = sadd.s32 %s136, 1
      %s138 = scalar_select %p135, %s136, %s137
      %p141 = pneg %p135
      %p142 = scmp.eq.s32.totalorder %s16, 3
      %p143 = por %p141, %p142
      %p144 = scmp.ne.s32.totalorder %s136, %s139
      %p145 = scmp.eq.s32.totalorder %s16, 0
      %p146 = por %p144, %p145
      %p147 = scmp.ne.s32.totalorder %s136, %s139
      %p148 = scmp.eq.s32.totalorder %s21, 3
      %p149 = por %p147, %p148
      %p150 = scmp.ne.s32.totalorder %s139, %s140
      %p151 = scmp.eq.s32.totalorder %s21, 0
      %p152 = por %p150, %p151
      %p153 = scmp.ne.s32.totalorder %s139, %s140
      %p154 = scmp.eq.s32.totalorder %s22, 3
      %p155 = por %p153, %p154
      %p157 = scmp.ne.s32.totalorder %s140, %s156
      %p158 = scmp.eq.s32.totalorder %s22, 0
      %p159 = por %p157, %p158
      %p160 = scmp.le.s32.totalorder 1, %s16
      %p161 = scmp.lt.s32.totalorder %s16, 5
      %p162 = pnand %p160, %p161
      %p163 = pneg %p162
      // Predicated region
      $region9: #{regression_forward.1} parent=5 // pred_check
        _
      $region10: #{regression_forward.1} parent=5 // pred_check_branch
        %165 = sbr.rel (%p162) target = $region12
      $region11: #{regression_forward.1} parent=5 // pred_region
        %s166 = ssub.s32 %s16, 1
        // Predicated region
        $region13: #{regression_forward.1} parent=11 // pred_check
          %p167 = pneg %p63
        $region14: #{regression_forward.1} parent=11 // pred_check_branch
          %169 = sbr.rel (%p167) target = $region16
        $region15: #{regression_forward.1} parent=11 // pred_region
          _
        $region16: #{regression_forward.1} parent=11 // pred_fallthru
          _
        // Predicated region
        $region17: #{regression_forward.1} parent=11 // pred_check
          %p170 = pneg %p84
        $region18: #{regression_forward.1} parent=11 // pred_check_branch
          %172 = sbr.rel (%p170) target = $region20
        $region19: #{regression_forward.1} parent=11 // pred_region
          _
        $region20: #{regression_forward.1} parent=11 // pred_fallthru
          _
        // Predicated region
        $region21: #{regression_forward.1} parent=11 // pred_check
          %p173 = pneg %p105
        $region22: #{regression_forward.1} parent=11 // pred_check_branch
          %175 = sbr.rel (%p173) target = $region24
        $region23: #{regression_forward.1} parent=11 // pred_region
          _
        $region24: #{regression_forward.1} parent=11 // pred_fallthru
          _
        // Predicated region
        $region25: #{regression_forward.1} parent=11 // pred_check
          %p176 = pneg %p126
        $region26: #{regression_forward.1} parent=11 // pred_check_branch
          %178 = sbr.rel (%p176) target = $region28
        $region27: #{regression_forward.1} parent=11 // pred_region
          _
        $region28: #{regression_forward.1} parent=11 // pred_fallthru
          _
      $region12: #{regression_forward.1} parent=5 // pred_fallthru
        _
      %p179 = scmp.lt.s32.totalorder %s16, 4
      // Predicated region
      $region29: #{regression_forward.1} parent=5 // pred_check
        %p180 = pneg %p179
      $region30: #{regression_forward.1} parent=5 // pred_check_branch
        %182 = sbr.rel (%p180) target = $region32
      $region31: #{regression_forward.1} parent=5 // pred_region
        // Predicated region
        $region33: #{regression_forward.1} parent=31 // pred_check
          %p183 = pneg %p36
        $region34: #{regression_forward.1} parent=31 // pred_check_branch
          %185 = sbr.rel (%p183) target = $region36
        $region35: #{regression_forward.1} parent=31 // pred_region
          %s186 = smul.u32 16, %s16
          %p187 = scmp.lt.s32.totalorder %s186, 63
          %s188 = scalar_select %p187, %s186, 63
          %s189 = smul.addr %s188, 8
          %s190 = scalar_lea.vmem %s0, %s189
          %s191 = smul.u32 16, %s16
        $region36: #{regression_forward.1} parent=31 // pred_fallthru
          _
      $region32: #{regression_forward.1} parent=5 // pred_fallthru
        _
      %p192 = scmp.le.s32.totalorder 1, %s16
      %p193 = scmp.lt.s32.totalorder %s16, 5
      %p194 = pnand %p192, %p193
      %p195 = pneg %p194
      // Predicated region
      $region37: #{regression_forward.1} parent=5 // pred_check
        _
      $region38: #{regression_forward.1} parent=5 // pred_check_branch
        %197 = sbr.rel (%p194) target = $region40
      $region39: #{regression_forward.1} parent=5 // pred_region
        %s198 = ssub.s32 %s16, 1
        %s199 = smul.u32 16, %s21
        %p200 = scmp.lt.s32.totalorder %s199, 63
        %s201 = scalar_select %p200, %s199, 63
        %s202 = smul.addr %s201, 8
        %s203 = scalar_lea.vmem %s0, %s202
        %p204 = pneg %p42
        %p205 = pneg %p39
        %p206 = pneg %p63
        %p207 = pneg %p60
        %p208 = pneg %p84
        %p209 = pneg %p81
        %p210 = pneg %p105
        %p211 = pneg %p102
        %p212 = pneg %p126
        %p213 = pneg %p123
        %p214 = pneg %p152
        %p215 = pneg %p149
        %s216 = sand.u32 %s139, 1
        %s217 = scalar_lea.sflag [#allocation4], %s216
        %s218 = sand.u32 %s139, 1
        %s219 = scalar_lea.vmem [#allocation3], %s218
        %s220 = smul.u32 16, %s21
        %p221 = scmp.lt.s32.totalorder %s220, 63
        %s222 = scalar_select %p221, %s220, 63
        %s223 = smul.addr %s222, 8
        %s224 = scalar_lea.vmem %s0, %s223
        %s225 = smul.u32 16, %s21
        %v227 = vld [vmem:[%s224] sm:$0xff]
        %v228 = vld [vmem:[%s224 + $0x8] sm:$0xff]
        %v229 = vld [vmem:[%s224 + $0x10] sm:$0xff]
        %v230 = vld [vmem:[%s224 + $0x18] sm:$0xff]
        %v231 = vld [vmem:[%s224 + $0x20] sm:$0xff]
        %v232 = vld [vmem:[%s224 + $0x28] sm:$0xff]
        %v233 = vld [vmem:[%s224 + $0x30] sm:$0xff]
        %v234 = vld [vmem:[%s224 + $0x38] sm:$0xff]
        %v235 = vld [vmem:[%s224 + $0x40] sm:$0xff]
        %v236 = vld [vmem:[%s224 + $0x48] sm:$0xff]
        %v237 = vld [vmem:[%s224 + $0x50] sm:$0xff]
        %v238 = vld [vmem:[%s224 + $0x58] sm:$0xff]
        %v239 = vld [vmem:[%s224 + $0x60] sm:$0xff]
        %v240 = vld [vmem:[%s224 + $0x68] sm:$0xff]
        %v241 = vld [vmem:[%s224 + $0x70] sm:$0xff]
        %v242 = vld [vmem:[%s224 + $0x78] sm:$0xff]
        %v243 = vpack.c.bf16 %v228, %v227
        %v244 = vpack.c.bf16 %v230, %v229
        %v245 = vpack.c.bf16 %v232, %v231
        %v246 = vpack.c.bf16 %v234, %v233
        %v247 = vpack.c.bf16 %v236, %v235
        %v248 = vpack.c.bf16 %v238, %v237
        %v249 = vpack.c.bf16 %v240, %v239
        %v250 = vpack.c.bf16 %v242, %v241
        %v251 = vld [vmem:[%s3] sm:$0xff]
        %v252 = vld [vmem:[%s3 + $0x8] sm:$0xff]
        %v253 = vld [vmem:[%s3 + $0x10] sm:$0xff]
        %v254 = vld [vmem:[%s3 + $0x18] sm:$0xff]
        %v255 = vld [vmem:[%s3 + $0x20] sm:$0xff]
        %v256 = vld [vmem:[%s3 + $0x28] sm:$0xff]
        %v257 = vld [vmem:[%s3 + $0x30] sm:$0xff]
        %v258 = vld [vmem:[%s3 + $0x38] sm:$0xff]
        %v259 = vld [vmem:[%s3 + $0x40] sm:$0xff]
        %v260 = vld [vmem:[%s3 + $0x48] sm:$0xff]
        %v261 = vld [vmem:[%s3 + $0x50] sm:$0xff]
        %v262 = vld [vmem:[%s3 + $0x58] sm:$0xff]
        %v263 = vld [vmem:[%s3 + $0x60] sm:$0xff]
        %v264 = vld [vmem:[%s3 + $0x68] sm:$0xff]
        %v265 = vld [vmem:[%s3 + $0x70] sm:$0xff]
        %v266 = vld [vmem:[%s3 + $0x78] sm:$0xff]
        %v267 = vld [vmem:[%s1] sm:$0xf]
        %v268 = vld [vmem:[%s1 + $0x4] sm:$0xf]
        %v269 = vld [vmem:[%s1 + $0x8] sm:$0xf]
        %v270 = vld [vmem:[%s1 + $0xc] sm:$0xf]
        %v271 = vld [vmem:[%s1 + $0x10] sm:$0xf]
        %v272 = vld [vmem:[%s1 + $0x14] sm:$0xf]
        %v273 = vld [vmem:[%s1 + $0x18] sm:$0xf]
        %v274 = vld [vmem:[%s1 + $0x1c] sm:$0xf]
        %v275 = vld [vmem:[%s1 + $0x20] sm:$0xf]
        %v276 = vld [vmem:[%s1 + $0x24] sm:$0xf]
        %v277 = vld [vmem:[%s1 + $0x28] sm:$0xf]
        %v278 = vld [vmem:[%s1 + $0x2c] sm:$0xf]
        %v279 = vld [vmem:[%s1 + $0x30] sm:$0xf]
        %v280 = vld [vmem:[%s1 + $0x34] sm:$0xf]
        %v281 = vld [vmem:[%s1 + $0x38] sm:$0xf]
        %v282 = vld [vmem:[%s1 + $0x3c] sm:$0xf]
        %284 = vset.pattern.permute.xlu0 0
        %285 = vperm.xlu0 %284, %v251
        %v286 = vpop.permute.xlu0 %285
        %289 = vset.pattern.permute.xlu0 0
        %290 = vperm.xlu0 %289, %v252
        %v291 = vpop.permute.xlu0 %290
        %294 = vset.pattern.permute.xlu0 0
        %295 = vperm.xlu0 %294, %v253
        %v296 = vpop.permute.xlu0 %295
        %299 = vset.pattern.permute.xlu0 0
        %300 = vperm.xlu0 %299, %v254
        %v301 = vpop.permute.xlu0 %300
        %304 = vset.pattern.permute.xlu0 0
        %305 = vperm.xlu0 %304, %v255
        %v306 = vpop.permute.xlu0 %305
        %309 = vset.pattern.permute.xlu0 0
        %310 = vperm.xlu0 %309, %v256
        %v311 = vpop.permute.xlu0 %310
        %314 = vset.pattern.permute.xlu0 0
        %315 = vperm.xlu0 %314, %v257
        %v316 = vpop.permute.xlu0 %315
        %319 = vset.pattern.permute.xlu0 0
        %320 = vperm.xlu0 %319, %v258
        %v321 = vpop.permute.xlu0 %320
        %324 = vset.pattern.permute.xlu0 0
        %325 = vperm.xlu0 %324, %v259
        %v326 = vpop.permute.xlu0 %325
        %329 = vset.pattern.permute.xlu0 0
        %330 = vperm.xlu0 %329, %v260
        %v331 = vpop.permute.xlu0 %330
        %334 = vset.pattern.permute.xlu0 0
        %335 = vperm.xlu0 %334, %v261
        %v336 = vpop.permute.xlu0 %335
        %339 = vset.pattern.permute.xlu0 0
        %340 = vperm.xlu0 %339, %v262
        %v341 = vpop.permute.xlu0 %340
        %344 = vset.pattern.permute.xlu0 0
        %345 = vperm.xlu0 %344, %v263
        %v346 = vpop.permute.xlu0 %345
        %349 = vset.pattern.permute.xlu0 0
        %350 = vperm.xlu0 %349, %v264
        %v351 = vpop.permute.xlu0 %350
        %354 = vset.pattern.permute.xlu0 0
        %355 = vperm.xlu0 %354, %v265
        %v356 = vpop.permute.xlu0 %355
        %359 = vset.pattern.permute.xlu0 0
        %360 = vperm.xlu0 %359, %v266
        %v361 = vpop.permute.xlu0 %360
        %v379 = vunpack.c.l.b16 %v267
        %v380 = vunpack.c.l.b16 %v268
        %v381 = vunpack.c.l.b16 %v269
        %v382 = vunpack.c.l.b16 %v270
        %v383 = vunpack.c.l.b16 %v271
        %v384 = vunpack.c.l.b16 %v272
        %v385 = vunpack.c.l.b16 %v273
        %v386 = vunpack.c.l.b16 %v274
        %v387 = vunpack.c.l.b16 %v275
        %v388 = vunpack.c.l.b16 %v276
        %v389 = vunpack.c.l.b16 %v277
        %v390 = vunpack.c.l.b16 %v278
        %v391 = vunpack.c.l.b16 %v279
        %v392 = vunpack.c.l.b16 %v280
        %v393 = vunpack.c.l.b16 %v281
        %v394 = vunpack.c.l.b16 %v282
        %v395 = vpack.c.b16 %v380, %v379
        %v396 = vpack.c.b16 %v382, %v381
        %v397 = vpack.c.b16 %v384, %v383
        %v398 = vpack.c.b16 %v386, %v385
        %v399 = vpack.c.b16 %v388, %v387
        %v400 = vpack.c.b16 %v390, %v389
        %v401 = vpack.c.b16 %v392, %v391
        %v402 = vpack.c.b16 %v394, %v393
        %vm403 = vcmask 261120
        %v405 = vsel %vm403, %v395, 0
        %v408 = vsel %vm403, %v396, 0
        %v411 = vsel %vm403, %v397, 0
        %v414 = vsel %vm403, %v398, 0
        %v417 = vsel %vm403, %v399, 0
        %v420 = vsel %vm403, %v400, 0
        %v423 = vsel %vm403, %v401, 0
        %v426 = vsel %vm403, %v402, 0
        %v429 = vsel %vm403, %v243, 0
        %v432 = vsel %vm403, %v244, 0
        %v435 = vsel %vm403, %v245, 0
        %v438 = vsel %vm403, %v246, 0
        %v441 = vsel %vm403, %v247, 0
        %v444 = vsel %vm403, %v248, 0
        %v447 = vsel %vm403, %v249, 0
        %v450 = vsel %vm403, %v250, 0
        %452 = vmatprep.subr.bf16.mxu0 0
        %453 = vmatpush1.bf16.xpose.msra.mxu0 %v429
        %454 = vmatprep.subr.bf16.mxu0 0
        %455 = vmatpush1.bf16.xpose.msra.mxu0 %v432
        %456 = vmatprep.subr.bf16.mxu0 0
        %457 = vmatpush1.bf16.xpose.msra.mxu0 %v435
        %458 = vmatprep.subr.bf16.mxu0 0
        %459 = vmatpush1.bf16.xpose.msra.mxu0 %v438
        %460 = vmatprep.subr.bf16.mxu0 0
        %461 = vmatpush1.bf16.xpose.msra.mxu0 %v441
        %462 = vmatprep.subr.bf16.mxu0 0
        %463 = vmatpush1.bf16.xpose.msra.mxu0 %v444
        %464 = vmatprep.subr.bf16.mxu0 0
        %465 = vmatpush1.bf16.xpose.msra.mxu0 %v447
        %466 = vmatprep.subr.bf16.mxu0 0
        %467 = vmatpush1.bf16.xpose.msra.mxu0 %v450
        %468 = vmatprep.subr.bf16.mxu0 0
        %469 = vmatpush1.bf16.xpose.msra.mxu0 0
        %470 = vmatprep.subr.bf16.mxu0 0
        %471 = vmatpush1.bf16.xpose.msra.mxu0 0
        %472 = vmatprep.subr.bf16.mxu0 0
        %473 = vmatpush1.bf16.xpose.msra.mxu0 0
        %474 = vmatprep.subr.bf16.mxu0 0
        %475 = vmatpush1.bf16.xpose.msra.mxu0 0
        %476 = vmatprep.subr.bf16.mxu0 0
        %477 = vmatpush1.bf16.xpose.msra.mxu0 0
        %478 = vmatprep.subr.bf16.mxu0 0
        %479 = vmatpush1.bf16.xpose.msra.mxu0 0
        %480 = vmatprep.subr.bf16.mxu0 0
        %481 = vmatpush1.bf16.xpose.msra.mxu0 0
        %482 = vmatprep.subr.bf16.mxu0 0
        %483 = vmatpush1.bf16.xpose.msra.mxu0 0
        %484 = vmatprep.mubr.bf16.mxu0 0
        %485 = vmatmul.mubr.bf16.gmra.mrb[0].mxu0 %v405
        %v486 = vpop.f32.mrb[0].mxu0
        %v487 = vadd.f32 %v286, %v486
        %v488 = vpop.f32.mrb[0].mxu0
        %v489 = vpop.f32.mrb[0].mxu0
        %v490 = vadd.f32 %v291, %v489
        %v491 = vpop.f32.mrb[0].mxu0
        %492 = vmatprep.mubr.bf16.mxu0 0
        %493 = vmatmul.mubr.bf16.gmra.mrb[0].mxu0 %v408
        %v494 = vpop.f32.mrb[0].mxu0
        %v495 = vadd.f32 %v296, %v494
        %v496 = vpop.f32.mrb[0].mxu0
        %v497 = vpop.f32.mrb[0].mxu0
        %v498 = vadd.f32 %v301, %v497
        %v499 = vpop.f32.mrb[0].mxu0
        %500 = vmatprep.mubr.bf16.mxu0 0
        %501 = vmatmul.mubr.bf16.gmra.mrb[0].mxu0 %v411
        %v502 = vpop.f32.mrb[0].mxu0
        %v503 = vadd.f32 %v306, %v502
        %v504 = vpop.f32.mrb[0].mxu0
        %v505 = vpop.f32.mrb[0].mxu0
        %v506 = vadd.f32 %v311, %v505
        %v507 = vpop.f32.mrb[0].mxu0
        %508 = vmatprep.mubr.bf16.mxu0 0
        %509 = vmatmul.mubr.bf16.gmra.mrb[0].mxu0 %v414
        %v510 = vpop.f32.mrb[0].mxu0
        %v511 = vadd.f32 %v316, %v510
        %v512 = vpop.f32.mrb[0].mxu0
        %v513 = vpop.f32.mrb[0].mxu0
        %v514 = vadd.f32 %v321, %v513
        %v515 = vpop.f32.mrb[0].mxu0
        %516 = vmatprep.mubr.bf16.mxu0 0
        %517 = vmatmul.mubr.bf16.gmra.mrb[0].mxu0 %v417
        %v518 = vpop.f32.mrb[0].mxu0
        %v519 = vadd.f32 %v326, %v518
        %v520 = vpop.f32.mrb[0].mxu0
        %v521 = vpop.f32.mrb[0].mxu0
        %v522 = vadd.f32 %v331, %v521
        %v523 = vpop.f32.mrb[0].mxu0
        %524 = vmatprep.mubr.bf16.mxu0 0
        %525 = vmatmul.mubr.bf16.gmra.mrb[0].mxu0 %v420
        %v526 = vpop.f32.mrb[0].mxu0
        %v527 = vadd.f32 %v336, %v526
        %v528 = vpop.f32.mrb[0].mxu0
        %v529 = vpop.f32.mrb[0].mxu0
        %v530 = vadd.f32 %v341, %v529
        %v531 = vpop.f32.mrb[0].mxu0
        %532 = vmatprep.mubr.bf16.mxu0 0
        %533 = vmatmul.mubr.bf16.gmra.mrb[0].mxu0 %v423
        %v534 = vpop.f32.mrb[0].mxu0
        %v535 = vadd.f32 %v346, %v534
        %v536 = vpop.f32.mrb[0].mxu0
        %v537 = vpop.f32.mrb[0].mxu0
        %v538 = vadd.f32 %v351, %v537
        %v539 = vpop.f32.mrb[0].mxu0
        %540 = vmatprep.mubr.bf16.mxu0 0
        %541 = vmatmul.mubr.bf16.gmra.mrb[0].mxu0 %v426
        %v542 = vpop.f32.mrb[0].mxu0
        %v543 = vadd.f32 %v356, %v542
        %v544 = vpop.f32.mrb[0].mxu0
        %v545 = vpop.f32.mrb[0].mxu0
        %v546 = vadd.f32 %v361, %v545
        %v547 = vpop.f32.mrb[0].mxu0
        %548 = vdwg.mxu0
        %v549 = vmax.f32 %v487, 0.0
        %v550 = vmax.f32 %v490, 0.0
        %v551 = vmax.f32 %v495, 0.0
        %v552 = vmax.f32 %v498, 0.0
        %v553 = vmax.f32 %v503, 0.0
        %v554 = vmax.f32 %v506, 0.0
        %v555 = vmax.f32 %v511, 0.0
        %v556 = vmax.f32 %v514, 0.0
        %v557 = vmax.f32 %v519, 0.0
        %v558 = vmax.f32 %v522, 0.0
        %v559 = vmax.f32 %v527, 0.0
        %v560 = vmax.f32 %v530, 0.0
        %v561 = vmax.f32 %v535, 0.0
        %v562 = vmax.f32 %v538, 0.0
        %v563 = vmax.f32 %v543, 0.0
        %v564 = vmax.f32 %v546, 0.0
        %v565 = vld [vmem:[%s2] sm:$0xf]
        %v566 = vld [vmem:[%s2 + $0x4] sm:$0xf]
        %v567 = vld [vmem:[%s2 + $0x8] sm:$0xf]
        %v568 = vld [vmem:[%s2 + $0xc] sm:$0xf]
        %v569 = vld [vmem:[%s2 + $0x10] sm:$0xf]
        %v570 = vld [vmem:[%s2 + $0x14] sm:$0xf]
        %v571 = vld [vmem:[%s2 + $0x18] sm:$0xf]
        %v572 = vld [vmem:[%s2 + $0x1c] sm:$0xf]
        %v573 = vld [vmem:[%s2 + $0x20] sm:$0xf]
        %v574 = vld [vmem:[%s2 + $0x24] sm:$0xf]
        %v575 = vld [vmem:[%s2 + $0x28] sm:$0xf]
        %v576 = vld [vmem:[%s2 + $0x2c] sm:$0xf]
        %v577 = vld [vmem:[%s2 + $0x30] sm:$0xf]
        %v578 = vld [vmem:[%s2 + $0x34] sm:$0xf]
        %v579 = vld [vmem:[%s2 + $0x38] sm:$0xf]
        %v580 = vld [vmem:[%s2 + $0x3c] sm:$0xf]
        %v581 = vpack.c.bf16 %v550, %v549
        %v582 = vpack.c.bf16 %v552, %v551
        %v583 = vpack.c.bf16 %v554, %v553
        %v584 = vpack.c.bf16 %v556, %v555
        %v585 = vpack.c.bf16 %v558, %v557
        %v586 = vpack.c.bf16 %v560, %v559
        %v587 = vpack.c.bf16 %v562, %v561
        %v588 = vpack.c.bf16 %v564, %v563
        %589 = vset.pattern.permute.xlu0 1
        %590 = vperm.xlu0 %589, %v251
        %v591 = vpop.permute.xlu0 %590
        %593 = vset.pattern.permute.xlu0 1
        %594 = vperm.xlu0 %593, %v252
        %v595 = vpop.permute.xlu0 %594
        %597 = vset.pattern.permute.xlu0 1
        %598 = vperm.xlu0 %597, %v253
        %v599 = vpop.permute.xlu0 %598
        %601 = vset.pattern.permute.xlu0 1
        %602 = vperm.xlu0 %601, %v254
        %v603 = vpop.permute.xlu0 %602
        %605 = vset.pattern.permute.xlu0 1
        %606 = vperm.xlu0 %605, %v255
        %v607 = vpop.permute.xlu0 %606
        %609 = vset.pattern.permute.xlu0 1
        %610 = vperm.xlu0 %609, %v256
        %v611 = vpop.permute.xlu0 %610
        %613 = vset.pattern.permute.xlu0 1
        %614 = vperm.xlu0 %613, %v257
        %v615 = vpop.permute.xlu0 %614
        %617 = vset.pattern.permute.xlu0 1
        %618 = vperm.xlu0 %617, %v258
        %v619 = vpop.permute.xlu0 %618
        %621 = vset.pattern.permute.xlu0 1
        %622 = vperm.xlu0 %621, %v259
        %v623 = vpop.permute.xlu0 %622
        %625 = vset.pattern.permute.xlu0 1
        %626 = vperm.xlu0 %625, %v260
        %v627 = vpop.permute.xlu0 %626
        %629 = vset.pattern.permute.xlu0 1
        %630 = vperm.xlu0 %629, %v261
        %v631 = vpop.permute.xlu0 %630
        %633 = vset.pattern.permute.xlu0 1
        %634 = vperm.xlu0 %633, %v262
        %v635 = vpop.permute.xlu0 %634
        %637 = vset.pattern.permute.xlu0 1
        %638 = vperm.xlu0 %637, %v263
        %v639 = vpop.permute.xlu0 %638
        %641 = vset.pattern.permute.xlu0 1
        %642 = vperm.xlu0 %641, %v264
        %v643 = vpop.permute.xlu0 %642
        %645 = vset.pattern.permute.xlu0 1
        %646 = vperm.xlu0 %645, %v265
        %v647 = vpop.permute.xlu0 %646
        %649 = vset.pattern.permute.xlu0 1
        %650 = vperm.xlu0 %649, %v266
        %v651 = vpop.permute.xlu0 %650
        %v669 = vunpack.c.l.b16 %v565
        %v670 = vunpack.c.l.b16 %v566
        %v671 = vunpack.c.l.b16 %v567
        %v672 = vunpack.c.l.b16 %v568
        %v673 = vunpack.c.l.b16 %v569
        %v674 = vunpack.c.l.b16 %v570
        %v675 = vunpack.c.l.b16 %v571
        %v676 = vunpack.c.l.b16 %v572
        %v677 = vunpack.c.l.b16 %v573
        %v678 = vunpack.c.l.b16 %v574
        %v679 = vunpack.c.l.b16 %v575
        %v680 = vunpack.c.l.b16 %v576
        %v681 = vunpack.c.l.b16 %v577
        %v682 = vunpack.c.l.b16 %v578
        %v683 = vunpack.c.l.b16 %v579
        %v684 = vunpack.c.l.b16 %v580
        %v685 = vpack.c.b16 %v670, %v669
        %v686 = vpack.c.b16 %v672, %v671
        %v687 = vpack.c.b16 %v674, %v673
        %v688 = vpack.c.b16 %v676, %v675
        %v689 = vpack.c.b16 %v678, %v677
        %v690 = vpack.c.b16 %v680, %v679
        %v691 = vpack.c.b16 %v682, %v681
        %v692 = vpack.c.b16 %v684, %v683
        %701 = vmatprep.subr.bf16.mxu0 0
        %702 = vmatpush1.bf16.msra.mxu0 %v581
        %703 = vmatprep.subr.bf16.mxu0 0
        %704 = vmatpush1.bf16.msra.mxu0 %v582
        %705 = vmatprep.subr.bf16.mxu0 0
        %706 = vmatpush1.bf16.msra.mxu0 %v583
        %707 = vmatprep.subr.bf16.mxu0 0
        %708 = vmatpush1.bf16.msra.mxu0 %v584
        %709 = vmatprep.subr.bf16.mxu0 0
        %710 = vmatpush1.bf16.msra.mxu0 %v585
        %711 = vmatprep.subr.bf16.mxu0 0
        %712 = vmatpush1.bf16.msra.mxu0 %v586
        %713 = vmatprep.subr.bf16.mxu0 0
        %714 = vmatpush1.bf16.msra.mxu0 %v587
        %715 = vmatprep.subr.bf16.mxu0 0
        %716 = vmatpush1.bf16.msra.mxu0 %v588
        %717 = vmatprep.subr.bf16.mxu0 0
        %718 = vmatpush1.bf16.msra.mxu0 0
        %719 = vmatprep.subr.bf16.mxu0 0
        %720 = vmatpush1.bf16.msra.mxu0 0
        %721 = vmatprep.subr.bf16.mxu0 0
        %722 = vmatpush1.bf16.msra.mxu0 0
        %723 = vmatprep.subr.bf16.mxu0 0
        %724 = vmatpush1.bf16.msra.mxu0 0
        %725 = vmatprep.subr.bf16.mxu0 0
        %726 = vmatpush1.bf16.msra.mxu0 0
        %727 = vmatprep.subr.bf16.mxu0 0
        %728 = vmatpush1.bf16.msra.mxu0 0
        %729 = vmatprep.subr.bf16.mxu0 0
        %730 = vmatpush1.bf16.msra.mxu0 0
        %731 = vmatprep.subr.bf16.mxu0 0
        %732 = vmatpush1.bf16.msra.mxu0 0
        %733 = vmatprep.mubr.bf16.mxu0 0
        %734 = vmatmul.mubr.bf16.gmra.mrb[0].mxu0 %v685
        %v735 = vpop.f32.mrb[0].mxu0
        %v736 = vadd.f32 %v591, %v735
        %v737 = vpop.f32.mrb[0].mxu0
        %v738 = vpop.f32.mrb[0].mxu0
        %v739 = vadd.f32 %v595, %v738
        %v740 = vpop.f32.mrb[0].mxu0
        %741 = vmatprep.mubr.bf16.mxu0 0
        %742 = vmatmul.mubr.bf16.gmra.mrb[0].mxu0 %v686
        %v743 = vpop.f32.mrb[0].mxu0
        %v744 = vadd.f32 %v599, %v743
        %v745 = vpop.f32.mrb[0].mxu0
        %v746 = vpop.f32.mrb[0].mxu0
        %v747 = vadd.f32 %v603, %v746
        %v748 = vpop.f32.mrb[0].mxu0
        %749 = vmatprep.mubr.bf16.mxu0 0
        %750 = vmatmul.mubr.bf16.gmra.mrb[0].mxu0 %v687
        %v751 = vpop.f32.mrb[0].mxu0
        %v752 = vadd.f32 %v607, %v751
        %v753 = vpop.f32.mrb[0].mxu0
        %v754 = vpop.f32.mrb[0].mxu0
        %v755 = vadd.f32 %v611, %v754
        %v756 = vpop.f32.mrb[0].mxu0
        %757 = vmatprep.mubr.bf16.mxu0 0
        %758 = vmatmul.mubr.bf16.gmra.mrb[0].mxu0 %v688
        %v759 = vpop.f32.mrb[0].mxu0
        %v760 = vadd.f32 %v615, %v759
        %v761 = vpop.f32.mrb[0].mxu0
        %v762 = vpop.f32.mrb[0].mxu0
        %v763 = vadd.f32 %v619, %v762
        %v764 = vpop.f32.mrb[0].mxu0
        %765 = vmatprep.mubr.bf16.mxu0 0
        %766 = vmatmul.mubr.bf16.gmra.mrb[0].mxu0 %v689
        %v767 = vpop.f32.mrb[0].mxu0
        %v768 = vadd.f32 %v623, %v767
        %v769 = vpop.f32.mrb[0].mxu0
        %v770 = vpop.f32.mrb[0].mxu0
        %v771 = vadd.f32 %v627, %v770
        %v772 = vpop.f32.mrb[0].mxu0
        %773 = vmatprep.mubr.bf16.mxu0 0
        %774 = vmatmul.mubr.bf16.gmra.mrb[0].mxu0 %v690
        %v775 = vpop.f32.mrb[0].mxu0
        %v776 = vadd.f32 %v631, %v775
        %v777 = vpop.f32.mrb[0].mxu0
        %v778 = vpop.f32.mrb[0].mxu0
        %v779 = vadd.f32 %v635, %v778
        %v780 = vpop.f32.mrb[0].mxu0
        %781 = vmatprep.mubr.bf16.mxu0 0
        %782 = vmatmul.mubr.bf16.gmra.mrb[0].mxu0 %v691
        %v783 = vpop.f32.mrb[0].mxu0
        %v784 = vadd.f32 %v639, %v783
        %v785 = vpop.f32.mrb[0].mxu0
        %v786 = vpop.f32.mrb[0].mxu0
        %v787 = vadd.f32 %v643, %v786
        %v788 = vpop.f32.mrb[0].mxu0
        %789 = vmatprep.mubr.bf16.mxu0 0
        %790 = vmatmul.mubr.bf16.gmra.mrb[0].mxu0 %v692
        %v791 = vpop.f32.mrb[0].mxu0
        %v792 = vadd.f32 %v647, %v791
        %v793 = vpop.f32.mrb[0].mxu0
        %v794 = vpop.f32.mrb[0].mxu0
        %v795 = vadd.f32 %v651, %v794
        %v796 = vpop.f32.mrb[0].mxu0
        %797 = vdwg.mxu0
        %v798 = vmax.f32 %v736, 0.0
        %v799 = vmax.f32 %v739, 0.0
        %v800 = vmax.f32 %v744, 0.0
        %v801 = vmax.f32 %v747, 0.0
        %v802 = vmax.f32 %v752, 0.0
        %v803 = vmax.f32 %v755, 0.0
        %v804 = vmax.f32 %v760, 0.0
        %v805 = vmax.f32 %v763, 0.0
        %v806 = vmax.f32 %v768, 0.0
        %v807 = vmax.f32 %v771, 0.0
        %v808 = vmax.f32 %v776, 0.0
        %v809 = vmax.f32 %v779, 0.0
        %v810 = vmax.f32 %v784, 0.0
        %v811 = vmax.f32 %v787, 0.0
        %v812 = vmax.f32 %v792, 0.0
        %v813 = vmax.f32 %v795, 0.0
        %814 = vset.pattern.permute.xlu0 2
        %815 = vperm.xlu0 %814, %v251
        %v816 = vpop.permute.xlu0 %815
        %818 = vset.pattern.permute.xlu0 2
        %819 = vperm.xlu0 %818, %v252
        %v820 = vpop.permute.xlu0 %819
        %822 = vset.pattern.permute.xlu0 2
        %823 = vperm.xlu0 %822, %v253
        %v824 = vpop.permute.xlu0 %823
        %826 = vset.pattern.permute.xlu0 2
        %827 = vperm.xlu0 %826, %v254
        %v828 = vpop.permute.xlu0 %827
        %830 = vset.pattern.permute.xlu0 2
        %831 = vperm.xlu0 %830, %v255
        %v832 = vpop.permute.xlu0 %831
        %834 = vset.pattern.permute.xlu0 2
        %835 = vperm.xlu0 %834, %v256
        %v836 = vpop.permute.xlu0 %835
        %838 = vset.pattern.permute.xlu0 2
        %839 = vperm.xlu0 %838, %v257
        %v840 = vpop.permute.xlu0 %839
        %842 = vset.pattern.permute.xlu0 2
        %843 = vperm.xlu0 %842, %v258
        %v844 = vpop.permute.xlu0 %843
        %846 = vset.pattern.permute.xlu0 2
        %847 = vperm.xlu0 %846, %v259
        %v848 = vpop.permute.xlu0 %847
        %850 = vset.pattern.permute.xlu0 2
        %851 = vperm.xlu0 %850, %v260
        %v852 = vpop.permute.xlu0 %851
        %854 = vset.pattern.permute.xlu0 2
        %855 = vperm.xlu0 %854, %v261
        %v856 = vpop.permute.xlu0 %855
        %858 = vset.pattern.permute.xlu0 2
        %859 = vperm.xlu0 %858, %v262
        %v860 = vpop.permute.xlu0 %859
        %862 = vset.pattern.permute.xlu0 2
        %863 = vperm.xlu0 %862, %v263
        %v864 = vpop.permute.xlu0 %863
        %866 = vset.pattern.permute.xlu0 2
        %867 = vperm.xlu0 %866, %v264
        %v868 = vpop.permute.xlu0 %867
        %870 = vset.pattern.permute.xlu0 2
        %871 = vperm.xlu0 %870, %v265
        %v872 = vpop.permute.xlu0 %871
        %874 = vset.pattern.permute.xlu0 2
        %875 = vperm.xlu0 %874, %v266
        %v876 = vpop.permute.xlu0 %875
        %v878 = vmul.f32 %v798, %v816
        %v879 = vmul.f32 %v799, %v820
        %v880 = vmul.f32 %v800, %v824
        %v881 = vmul.f32 %v801, %v828
        %v882 = vmul.f32 %v802, %v832
        %v883 = vmul.f32 %v803, %v836
        %v884 = vmul.f32 %v804, %v840
        %v885 = vmul.f32 %v805, %v844
        %v886 = vmul.f32 %v806, %v848
        %v887 = vmul.f32 %v807, %v852
        %v888 = vmul.f32 %v808, %v856
        %v889 = vmul.f32 %v809, %v860
        %v890 = vmul.f32 %v810, %v864
        %v891 = vmul.f32 %v811, %v868
        %v892 = vmul.f32 %v812, %v872
        %v893 = vmul.f32 %v813, %v876
        %v894 = vadd.f32 %v878, %v879
        %v895 = vadd.f32 %v894, %v880
        %v896 = vadd.f32 %v895, %v881
        %v897 = vadd.f32 %v896, %v882
        %v898 = vadd.f32 %v897, %v883
        %v899 = vadd.f32 %v898, %v884
        %v900 = vadd.f32 %v899, %v885
        %v901 = vadd.f32 %v900, %v886
        %v902 = vadd.f32 %v901, %v887
        %v903 = vadd.f32 %v902, %v888
        %v904 = vadd.f32 %v903, %v889
        %v905 = vadd.f32 %v904, %v890
        %v906 = vadd.f32 %v905, %v891
        %v907 = vadd.f32 %v906, %v892
        %v908 = vadd.f32 %v907, %v893
        %v909 = vrot.slane %v908, 4
        %v910 = vadd.f32 %v908, %v909
        %v911 = vrot.slane %v910, 2
        %v912 = vadd.f32 %v910, %v911
        %v913 = vrot.slane %v912, 1
        %v914 = vadd.f32 %v912, %v913
        %v915 = vld [vmem:[#allocation2] sm:$0x1]
        %917 = vset.pattern.permute.xlu0 0
        %918 = vperm.xlu0 %917, %v915
        %v919 = vpop.permute.xlu0 %918
        %v921 = vlaneseq
        %v922 = vshrl.u32 %v921, 7
        %v923 = vsub.s32 0, %v922
        %v924 = vrot.slane %v919, %v923
        %v925 = vadd.f32 %v914, %v924
        %926 = vst [vmem:[%s219] sm:$0x1] %v925
        %s927 = sand.u32 %s139, 1
        %s928 = scalar_lea.sflag [#allocation4], %s927
        %s929 = sand.u32 %s139, 1
        %s930 = scalar_lea.vmem [#allocation3], %s929
        // Predicated region
        $region41: #{regression_forward.1} parent=39 // pred_check
          %p931 = pneg %p149
        $region42: #{regression_forward.1} parent=39 // pred_check_branch
          %933 = sbr.rel (%p931) target = $region44
        $region43: #{regression_forward.1} parent=39 // pred_region
          %s935 = ssub.s32 16, 16
          %936 = vsyncadd %s928, %s935
          %s937 = smul.addr %s21, 16
          %s938 = scalar_lea.hbm %s5, %s937
          %s940 = sshll.u32 %s930, 4
          %s941 = int_to_ptr.vmem [resolvable:$true] %s940
          %943 = dma.vmem_to_hbm [thread:$0]  %s941, 16, %s938, %s928
        $region44: #{regression_forward.1} parent=39 // pred_fallthru
          _
      $region40: #{regression_forward.1} parent=5 // pred_fallthru
        _
      %p944 = scmp.le.s32.totalorder 2, %s16
      // Predicated region
      $region45: #{regression_forward.1} parent=5 // pred_check
        %p945 = pneg %p944
      $region46: #{regression_forward.1} parent=5 // pred_check_branch
        %947 = sbr.rel (%p945) target = $region48
      $region47: #{regression_forward.1} parent=5 // pred_region
        %s948 = ssub.s32 %s16, 2
        // Predicated region
        $region49: #{regression_forward.1} parent=47 // pred_check
          %p949 = pneg %p155
        $region50: #{regression_forward.1} parent=47 // pred_check_branch
          %951 = sbr.rel (%p949) target = $region52
        $region51: #{regression_forward.1} parent=47 // pred_region
          %s952 = sand.u32 %s140, 1
          %s953 = scalar_lea.sflag [#allocation4], %s952
          %s954 = sand.u32 %s140, 1
          %s955 = scalar_lea.vmem [#allocation3], %s954
          %956 = dma.done %s953, 16
        $region52: #{regression_forward.1} parent=47 // pred_fallthru
          _
      $region48: #{regression_forward.1} parent=5 // pred_fallthru
        _
    $region6: #{regression_forward.1} parent=1 // loop_footer
      %s20 = sadd.s32 1, %s16
    $region7: #{regression_forward.1} parent=1 // loop_footer_branch
      %15 = sbr.rel target = $region3
    $region8: #{regression_forward.1} parent=1 // loop_exit
      _
    %957 = vsyncpa [#allocation4], 1
    %s958 = scalar_lea.sflag [#allocation4], 1
    %959 = vsyncpa %s958, 1

// kernel: regression_forward.1
$region0: #{regression_forward.1}
  #allocation0 [shape = 'u32[]', space=smem, size = 0x4, offset = 0x4, fixed_abs, tag = 'smem constant byte address 0x4 - core index']
  #allocation1 [shape = 'u32[144,128]{1,0:T(1,128)}', space=vmem, size = 0x12000, scoped, tag = 'internal scratch']
  #allocation2 [shape = 'f32[1,1]{1,0:T(1,128)S(1)}', space=vmem, size = 0x200, scoped, tag = 'scoped memory for regression_forward.1']
  %s0 = inlined_call_operand.vmem [shape: f32[512,32], index: 0, kind: input, shape index: {}]
  %s1 = inlined_call_operand.vmem [shape: bf16[128,32], index: 1, kind: input, shape index: {}]
  %s2 = inlined_call_operand.vmem [shape: bf16[128,128], index: 2, kind: input, shape index: {}]
  %s3 = inlined_call_operand.vmem [shape: f32[128,3], index: 3, kind: input, shape index: {}]
  %s4 = inlined_call_operand.<no memory space> [shape: f32[1,1], index: 4, kind: input, shape index: {}]
  %s5 = inlined_call_operand.hbm [shape: f32[1,512], index: 5, kind: output, shape index: {}]
  %s6 = sld [smem:[#allocation0]]
  $region53: #{regression_forward.1} parent=0
    _
  %s8 = ssub.s32 1, %s6
  %s9 = scalar_select 0, %s8, %s6
  %v10 = vstv %s4
  %11 = vst [vmem:[#allocation2] sm:$0x1] %v10
  $region1: #{regression_forward.1} parent=0
    #allocation3 [shape = 'u8[1024]{0}', space=vmem, size = 0x400, scoped, tag = 'output window, operand 0']
    #allocation4 [shape = 's32[2]{0}', space=sflag, size = 0x8, scoped, tag = 'scoped memory for regression_forward.1']
    %12 = vsyncpa [#allocation4], 0
    %s13 = scalar_lea.sflag [#allocation4], 1
    %14 = vsyncpa %s13, 0
    loop: start=0, step=1, limit=6
    $region2: #{regression_forward.1} parent=1 // loop_pre_header
      _
    $region3: #{regression_forward.1} parent=1 // loop_header
      %s16 = sphi 0, %s20
      %p17 = scmp.ge.s32.totalorder %s16, 6
      %s26 = sphi 0, %s28
      %s29 = sphi 0, %s26
      %s30 = sphi 0, %s29
      %s46 = sphi 0, %s30
      %s50 = sphi 0, %s50
      %s52 = sphi 0, %s50
      %s53 = sphi 0, %s52
      %s67 = sphi 0, %s53
      %s71 = sphi 0, %s71
      %s73 = sphi 0, %s71
      %s74 = sphi 0, %s73
      %s88 = sphi 0, %s74
      %s92 = sphi 0, %s92
      %s94 = sphi 0, %s92
      %s95 = sphi 0, %s94
      %s109 = sphi 0, %s95
      %s113 = sphi 0, %s113
      %s115 = sphi 0, %s113
      %s116 = sphi 0, %s115
      %s130 = sphi 0, %s116
      %s136 = sphi 0, %s138
      %s139 = sphi 0, %s136
      %s140 = sphi 0, %s139
      %s156 = sphi 0, %s140
    $region4: #{regression_forward.1} parent=1 // loop_header_branch
      %19 = sbr.rel (%p17) target = $region8
    $region5: #{regression_forward.1} parent=1 // loop_body
      %s21 = ssub.s32 %s16, 1
      %s22 = ssub.s32 %s16, 2
      %s23 = sadd.s32 %s16, 1
      %s24 = ssub.s32 %s16, %s23
      %p25 = scmp.eq.s32.totalorder %s24, 0
      %s27 = sadd.s32 %s26, 1
      %s28 = scalar_select %p25, %s26, %s27
      %p31 = pneg %p25
      %p32 = scmp.eq.s32.totalorder %s16, 3
      %p33 = por %p31, %p32
      %p34 = scmp.ne.s32.totalorder %s26, %s29
      %p35 = scmp.eq.s32.totalorder %s16, 0
      %p36 = por %p34, %p35
      %p37 = scmp.ne.s32.totalorder %s26, %s29
      %p38 = scmp.eq.s32.totalorder %s21, 3
      %p39 = por %p37, %p38
      %p40 = scmp.ne.s32.totalorder %s29, %s30
      %p41 = scmp.eq.s32.totalorder %s21, 0
      %p42 = por %p40, %p41
      %p43 = scmp.ne.s32.totalorder %s29, %s30
      %p44 = scmp.eq.s32.totalorder %s22, 3
      %p45 = por %p43, %p44
      %p47 = scmp.ne.s32.totalorder %s30, %s46
      %p48 = scmp.eq.s32.totalorder %s22, 0
      %p49 = por %p47, %p48
      %s51 = sadd.s32 %s50, 1
      %p54 = scmp.eq.s32.totalorder %s16, 3
      %p55 = scmp.ne.s32.totalorder %s50, %s52
      %p56 = scmp.eq.s32.totalorder %s16, 0
      %p57 = por %p55, %p56
      %p58 = scmp.ne.s32.totalorder %s50, %s52
      %p59 = scmp.eq.s32.totalorder %s21, 3
      %p60 = por %p58, %p59
      %p61 = scmp.ne.s32.totalorder %s52, %s53
      %p62 = scmp.eq.s32.totalorder %s21, 0
      %p63 = por %p61, %p62
      %p64 = scmp.ne.s32.totalorder %s52, %s53
      %p65 = scmp.eq.s32.totalorder %s22, 3
      %p66 = por %p64, %p65
      %p68 = scmp.ne.s32.totalorder %s53, %s67
      %p69 = scmp.eq.s32.totalorder %s22, 0
      %p70 = por %p68, %p69
      %s72 = sadd.s32 %s71, 1
      %p75 = scmp.eq.s32.totalorder %s16, 3
      %p76 = scmp.ne.s32.totalorder %s71, %s73
      %p77 = scmp.eq.s32.totalorder %s16, 0
      %p78 = por %p76, %p77
      %p79 = scmp.ne.s32.totalorder %s71, %s73
      %p80 = scmp.eq.s32.totalorder %s21, 3
      %p81 = por %p79, %p80
      %p82 = scmp.ne.s32.totalorder %s73, %s74
      %p83 = scmp.eq.s32.totalorder %s21, 0
      %p84 = por %p82, %p83
      %p85 = scmp.ne.s32.totalorder %s73, %s74
      %p86 = scmp.eq.s32.totalorder %s22, 3
      %p87 = por %p85, %p86
      %p89 = scmp.ne.s32.totalorder %s74, %s88
      %p90 = scmp.eq.s32.totalorder %s22, 0
      %p91 = por %p89, %p90
      %s93 = sadd.s32 %s92, 1
      %p96 = scmp.eq.s32.totalorder %s16, 3
      %p97 = scmp.ne.s32.totalorder %s92, %s94
      %p98 = scmp.eq.s32.totalorder %s16, 0
      %p99 = por %p97, %p98
      %p100 = scmp.ne.s32.totalorder %s92, %s94
      %p101 = scmp.eq.s32.totalorder %s21, 3
      %p102 = por %p100, %p101
      %p103 = scmp.ne.s32.totalorder %s94, %s95
      %p104 = scmp.eq.s32.totalorder %s21, 0
      %p105 = por %p103, %p104
      %p106 = scmp.ne.s32.totalorder %s94, %s95
      %p107 = scmp.eq.s32.totalorder %s22, 3
      %p108 = por %p106, %p107
      %p110 = scmp.ne.s32.totalorder %s95, %s109
      %p111 = scmp.eq.s32.totalorder %s22, 0
      %p112 = por %p110, %p111
      %s114 = sadd.s32 %s113, 1
      %p117 = scmp.eq.s32.totalorder %s16, 3
      %p118 = scmp.ne.s32.totalorder %s113, %s115
      %p119 = scmp.eq.s32.totalorder %s16, 0
      %p120 = por %p118, %p119
      %p121 = scmp.ne.s32.totalorder %s113, %s115
      %p122 = scmp.eq.s32.totalorder %s21, 3
      %p123 = por %p121, %p122
      %p124 = scmp.ne.s32.totalorder %s115, %s116
      %p125 = scmp.eq.s32.totalorder %s21, 0
      %p126 = por %p124, %p125
      %p127 = scmp.ne.s32.totalorder %s115, %s116
      %p128 = scmp.eq.s32.totalorder %s22, 3
      %p129 = por %p127, %p128
      %p131 = scmp.ne.s32.totalorder %s116, %s130
      %p132 = scmp.eq.s32.totalorder %s22, 0
      %p133 = por %p131, %p132
      %s134 = ssub.s32 %s16, %s23
      %p135 = scmp.eq.s32.totalorder %s134, 0
      %s137 = sadd.s32 %s136, 1
      %s138 = scalar_select %p135, %s136, %s137
      %p141 = pneg %p135
      %p142 = scmp.eq.s32.totalorder %s16, 3
      %p143 = por %p141, %p142
      %p144 = scmp.ne.s32.totalorder %s136, %s139
      %p145 = scmp.eq.s32.totalorder %s16, 0
      %p146 = por %p144, %p145
      %p147 = scmp.ne.s32.totalorder %s136, %s139
      %p148 = scmp.eq.s32.totalorder %s21, 3
      %p149 = por %p147, %p148
      %p150 = scmp.ne.s32.totalorder %s139, %s140
      %p151 = scmp.eq.s32.totalorder %s21, 0
      %p152 = por %p150, %p151
      %p153 = scmp.ne.s32.totalorder %s139, %s140
      %p154 = scmp.eq.s32.totalorder %s22, 3
      %p155 = por %p153, %p154
      %p157 = scmp.ne.s32.totalorder %s140, %s156
      %p158 = scmp.eq.s32.totalorder %s22, 0
      %p159 = por %p157, %p158
      %p160 = scmp.le.s32.totalorder 1, %s16
      %p161 = scmp.lt.s32.totalorder %s16, 5
      %p162 = pnand %p160, %p161
      %p163 = pneg %p162
      // Predicated region
      $region9: #{regression_forward.1} parent=5 // pred_check
        _
      $region10: #{regression_forward.1} parent=5 // pred_check_branch
        %165 = sbr.rel (%p162) target = $region12
      $region11: #{regression_forward.1} parent=5 // pred_region
        %s166 = ssub.s32 %s16, 1
        // Predicated region
        $region13: #{regression_forward.1} parent=11 // pred_check
          %p167 = pneg %p63
        $region14: #{regression_forward.1} parent=11 // pred_check_branch
          %169 = sbr.rel (%p167) target = $region16
        $region15: #{regression_forward.1} parent=11 // pred_region
          _
        $region16: #{regression_forward.1} parent=11 // pred_fallthru
          _
        // Predicated region
        $region17: #{regression_forward.1} parent=11 // pred_check
          %p170 = pneg %p84
        $region18: #{regression_forward.1} parent=11 // pred_check_branch
          %172 = sbr.rel (%p170) target = $region20
        $region19: #{regression_forward.1} parent=11 // pred_region
          _
        $region20: #{regression_forward.1} parent=11 // pred_fallthru
          _
        // Predicated region
        $region21: #{regression_forward.1} parent=11 // pred_check
          %p173 = pneg %p105
        $region22: #{regression_forward.1} parent=11 // pred_check_branch
          %175 = sbr.rel (%p173) target = $region24
        $region23: #{regression_forward.1} parent=11 // pred_region
          _
        $region24: #{regression_forward.1} parent=11 // pred_fallthru
          _
        // Predicated region
        $region25: #{regression_forward.1} parent=11 // pred_check
          %p176 = pneg %p126
        $region26: #{regression_forward.1} parent=11 // pred_check_branch
          %178 = sbr.rel (%p176) target = $region28
        $region27: #{regression_forward.1} parent=11 // pred_region
          _
        $region28: #{regression_forward.1} parent=11 // pred_fallthru
          _
      $region12: #{regression_forward.1} parent=5 // pred_fallthru
        _
      %p179 = scmp.lt.s32.totalorder %s16, 4
      // Predicated region
      $region29: #{regression_forward.1} parent=5 // pred_check
        %p180 = pneg %p179
      $region30: #{regression_forward.1} parent=5 // pred_check_branch
        %182 = sbr.rel (%p180) target = $region32
      $region31: #{regression_forward.1} parent=5 // pred_region
        // Predicated region
        $region33: #{regression_forward.1} parent=31 // pred_check
          %p183 = pneg %p36
        $region34: #{regression_forward.1} parent=31 // pred_check_branch
          %185 = sbr.rel (%p183) target = $region36
        $region35: #{regression_forward.1} parent=31 // pred_region
          %s186 = smul.u32 16, %s16
          %p187 = scmp.lt.s32.totalorder %s186, 63
          %s188 = scalar_select %p187, %s186, 63
          %s189 = smul.addr %s188, 8
          %s190 = scalar_lea.vmem %s0, %s189
          %s191 = smul.u32 16, %s16
        $region36: #{regression_forward.1} parent=31 // pred_fallthru
          _
      $region32: #{regression_forward.1} parent=5 // pred_fallthru
        _
      %p192 = scmp.le.s32.totalorder 1, %s16
      %p193 = scmp.lt.s32.totalorder %s16, 5
      %p194 = pnand %p192, %p193
      %p195 = pneg %p194
      // Predicated region
      $region37: #{regression_forward.1} parent=5 // pred_check
        _
      $region38: #{regression_forward.1} parent=5 // pred_check_branch
        %197 = sbr.rel (%p194) target = $region40
      $region39: #{regression_forward.1} parent=5 // pred_region
        %s198 = ssub.s32 %s16, 1
        %s199 = smul.u32 16, %s21
        %p200 = scmp.lt.s32.totalorder %s199, 63
        %s201 = scalar_select %p200, %s199, 63
        %s202 = smul.addr %s201, 8
        %s203 = scalar_lea.vmem %s0, %s202
        %p204 = pneg %p42
        %p205 = pneg %p39
        %p206 = pneg %p63
        %p207 = pneg %p60
        %p208 = pneg %p84
        %p209 = pneg %p81
        %p210 = pneg %p105
        %p211 = pneg %p102
        %p212 = pneg %p126
        %p213 = pneg %p123
        %p214 = pneg %p152
        %p215 = pneg %p149
        %s216 = sand.u32 %s139, 1
        %s217 = scalar_lea.sflag [#allocation4], %s216
        %s218 = sand.u32 %s139, 1
        %s219 = scalar_lea.vmem [#allocation3], %s218
        %s220 = smul.u32 16, %s21
        %p221 = scmp.lt.s32.totalorder %s220, 63
        %s222 = scalar_select %p221, %s220, 63
        %s223 = smul.addr %s222, 8
        %s224 = scalar_lea.vmem %s0, %s223
        %s225 = smul.u32 16, %s21
        %v227 = vld [vmem:[%s224] sm:$0xff]
        %v228 = vld [vmem:[%s224 + $0x8] sm:$0xff]
        %v229 = vld [vmem:[%s224 + $0x10] sm:$0xff]
        %v230 = vld [vmem:[%s224 + $0x18] sm:$0xff]
        %v231 = vld [vmem:[%s224 + $0x20] sm:$0xff]
        %v232 = vld [vmem:[%s224 + $0x28] sm:$0xff]
        %v233 = vld [vmem:[%s224 + $0x30] sm:$0xff]
        %v234 = vld [vmem:[%s224 + $0x38] sm:$0xff]
        %v235 = vld [vmem:[%s224 + $0x40] sm:$0xff]
        %v236 = vld [vmem:[%s224 + $0x48] sm:$0xff]
        %v237 = vld [vmem:[%s224 + $0x50] sm:$0xff]
        %v238 = vld [vmem:[%s224 + $0x58] sm:$0xff]
        %v239 = vld [vmem:[%s224 + $0x60] sm:$0xff]
        %v240 = vld [vmem:[%s224 + $0x68] sm:$0xff]
        %v241 = vld [vmem:[%s224 + $0x70] sm:$0xff]
        %v242 = vld [vmem:[%s224 + $0x78] sm:$0xff]
        %v243 = vpack.c.bf16 %v228, %v227
        %v244 = vpack.c.bf16 %v230, %v229
        %v245 = vpack.c.bf16 %v232, %v231
        %v246 = vpack.c.bf16 %v234, %v233
        %v247 = vpack.c.bf16 %v236, %v235
        %v248 = vpack.c.bf16 %v238, %v237
        %v249 = vpack.c.bf16 %v240, %v239
        %v250 = vpack.c.bf16 %v242, %v241
        %v251 = vld [vmem:[%s3] sm:$0xff]
        %v252 = vld [vmem:[%s3 + $0x8] sm:$0xff]
        %v253 = vld [vmem:[%s3 + $0x10] sm:$0xff]
        %v254 = vld [vmem:[%s3 + $0x18] sm:$0xff]
        %v255 = vld [vmem:[%s3 + $0x20] sm:$0xff]
        %v256 = vld [vmem:[%s3 + $0x28] sm:$0xff]
        %v257 = vld [vmem:[%s3 + $0x30] sm:$0xff]
        %v258 = vld [vmem:[%s3 + $0x38] sm:$0xff]
        %v259 = vld [vmem:[%s3 + $0x40] sm:$0xff]
        %v260 = vld [vmem:[%s3 + $0x48] sm:$0xff]
        %v261 = vld [vmem:[%s3 + $0x50] sm:$0xff]
        %v262 = vld [vmem:[%s3 + $0x58] sm:$0xff]
        %v263 = vld [vmem:[%s3 + $0x60] sm:$0xff]
        %v264 = vld [vmem:[%s3 + $0x68] sm:$0xff]
        %v265 = vld [vmem:[%s3 + $0x70] sm:$0xff]
        %v266 = vld [vmem:[%s3 + $0x78] sm:$0xff]
        %v267 = vld [vmem:[%s1] sm:$0xf]
        %v268 = vld [vmem:[%s1 + $0x4] sm:$0xf]
        %v269 = vld [vmem:[%s1 + $0x8] sm:$0xf]
        %v270 = vld [vmem:[%s1 + $0xc] sm:$0xf]
        %v271 = vld [vmem:[%s1 + $0x10] sm:$0xf]
        %v272 = vld [vmem:[%s1 + $0x14] sm:$0xf]
        %v273 = vld [vmem:[%s1 + $0x18] sm:$0xf]
        %v274 = vld [vmem:[%s1 + $0x1c] sm:$0xf]
        %v275 = vld [vmem:[%s1 + $0x20] sm:$0xf]
        %v276 = vld [vmem:[%s1 + $0x24] sm:$0xf]
        %v277 = vld [vmem:[%s1 + $0x28] sm:$0xf]
        %v278 = vld [vmem:[%s1 + $0x2c] sm:$0xf]
        %v279 = vld [vmem:[%s1 + $0x30] sm:$0xf]
        %v280 = vld [vmem:[%s1 + $0x34] sm:$0xf]
        %v281 = vld [vmem:[%s1 + $0x38] sm:$0xf]
        %v282 = vld [vmem:[%s1 + $0x3c] sm:$0xf]
        %284 = vset.pattern.permute.xlu0 0
        %285 = vperm.xlu0 %284, %v251
        %v286 = vpop.permute.xlu0 %285
        %289 = vset.pattern.permute.xlu0 0
        %290 = vperm.xlu0 %289, %v252
        %v291 = vpop.permute.xlu0 %290
        %294 = vset.pattern.permute.xlu0 0
        %295 = vperm.xlu0 %294, %v253
        %v296 = vpop.permute.xlu0 %295
        %299 = vset.pattern.permute.xlu0 0
        %300 = vperm.xlu0 %299, %v254
        %v301 = vpop.permute.xlu0 %300
        %304 = vset.pattern.permute.xlu0 0
        %305 = vperm.xlu0 %304, %v255
        %v306 = vpop.permute.xlu0 %305
        %309 = vset.pattern.permute.xlu0 0
        %310 = vperm.xlu0 %309, %v256
        %v311 = vpop.permute.xlu0 %310
        %314 = vset.pattern.permute.xlu0 0
        %315 = vperm.xlu0 %314, %v257
        %v316 = vpop.permute.xlu0 %315
        %319 = vset.pattern.permute.xlu0 0
        %320 = vperm.xlu0 %319, %v258
        %v321 = vpop.permute.xlu0 %320
        %324 = vset.pattern.permute.xlu0 0
        %325 = vperm.xlu0 %324, %v259
        %v326 = vpop.permute.xlu0 %325
        %329 = vset.pattern.permute.xlu0 0
        %330 = vperm.xlu0 %329, %v260
        %v331 = vpop.permute.xlu0 %330
        %334 = vset.pattern.permute.xlu0 0
        %335 = vperm.xlu0 %334, %v261
        %v336 = vpop.permute.xlu0 %335
        %339 = vset.pattern.permute.xlu0 0
        %340 = vperm.xlu0 %339, %v262
        %v341 = vpop.permute.xlu0 %340
        %344 = vset.pattern.permute.xlu0 0
        %345 = vperm.xlu0 %344, %v263
        %v346 = vpop.permute.xlu0 %345
        %349 = vset.pattern.permute.xlu0 0
        %350 = vperm.xlu0 %349, %v264
        %v351 = vpop.permute.xlu0 %350
        %354 = vset.pattern.permute.xlu0 0
        %355 = vperm.xlu0 %354, %v265
        %v356 = vpop.permute.xlu0 %355
        %359 = vset.pattern.permute.xlu0 0
        %360 = vperm.xlu0 %359, %v266
        %v361 = vpop.permute.xlu0 %360
        %v379 = vunpack.c.l.b16 %v267
        %v380 = vunpack.c.l.b16 %v268
        %v381 = vunpack.c.l.b16 %v269
        %v382 = vunpack.c.l.b16 %v270
        %v383 = vunpack.c.l.b16 %v271
        %v384 = vunpack.c.l.b16 %v272
        %v385 = vunpack.c.l.b16 %v273
        %v386 = vunpack.c.l.b16 %v274
        %v387 = vunpack.c.l.b16 %v275
        %v388 = vunpack.c.l.b16 %v276
        %v389 = vunpack.c.l.b16 %v277
        %v390 = vunpack.c.l.b16 %v278
        %v391 = vunpack.c.l.b16 %v279
        %v392 = vunpack.c.l.b16 %v280
        %v393 = vunpack.c.l.b16 %v281
        %v394 = vunpack.c.l.b16 %v282
        %v395 = vpack.c.b16 %v380, %v379
        %v396 = vpack.c.b16 %v382, %v381
        %v397 = vpack.c.b16 %v384, %v383
        %v398 = vpack.c.b16 %v386, %v385
        %v399 = vpack.c.b16 %v388, %v387
        %v400 = vpack.c.b16 %v390, %v389
        %v401 = vpack.c.b16 %v392, %v391
        %v402 = vpack.c.b16 %v394, %v393
        %vm403 = vcmask 261120
        %v405 = vsel %vm403, %v395, 0
        %v408 = vsel %vm403, %v396, 0
        %v411 = vsel %vm403, %v397, 0
        %v414 = vsel %vm403, %v398, 0
        %v417 = vsel %vm403, %v399, 0
        %v420 = vsel %vm403, %v400, 0
        %v423 = vsel %vm403, %v401, 0
        %v426 = vsel %vm403, %v402, 0
        %v429 = vsel %vm403, %v243, 0
        %v432 = vsel %vm403, %v244, 0
        %v435 = vsel %vm403, %v245, 0
        %v438 = vsel %vm403, %v246, 0
        %v441 = vsel %vm403, %v247, 0
        %v444 = vsel %vm403, %v248, 0
        %v447 = vsel %vm403, %v249, 0
        %v450 = vsel %vm403, %v250, 0
        %452 = vmatprep.subr.bf16.mxu0 0
        %453 = vmatpush1.bf16.xpose.msra.mxu0 %v429
        %454 = vmatprep.subr.bf16.mxu0 0
        %455 = vmatpush1.bf16.xpose.msra.mxu0 %v432
        %456 = vmatprep.subr.bf16.mxu0 0
        %457 = vmatpush1.bf16.xpose.msra.mxu0 %v435
        %458 = vmatprep.subr.bf16.mxu0 0
        %459 = vmatpush1.bf16.xpose.msra.mxu0 %v438
        %460 = vmatprep.subr.bf16.mxu0 0
        %461 = vmatpush1.bf16.xpose.msra.mxu0 %v441
        %462 = vmatprep.subr.bf16.mxu0 0
        %463 = vmatpush1.bf16.xpose.msra.mxu0 %v444
        %464 = vmatprep.subr.bf16.mxu0 0
        %465 = vmatpush1.bf16.xpose.msra.mxu0 %v447
        %466 = vmatprep.subr.bf16.mxu0 0
        %467 = vmatpush1.bf16.xpose.msra.mxu0 %v450
        %468 = vmatprep.subr.bf16.mxu0 0
        %469 = vmatpush1.bf16.xpose.msra.mxu0 0
        %470 = vmatprep.subr.bf16.mxu0 0
        %471 = vmatpush1.bf16.xpose.msra.mxu0 0
        %472 = vmatprep.subr.bf16.mxu0 0
        %473 = vmatpush1.bf16.xpose.msra.mxu0 0
        %474 = vmatprep.subr.bf16.mxu0 0
        %475 = vmatpush1.bf16.xpose.msra.mxu0 0
        %476 = vmatprep.subr.bf16.mxu0 0
        %477 = vmatpush1.bf16.xpose.msra.mxu0 0
        %478 = vmatprep.subr.bf16.mxu0 0
        %479 = vmatpush1.bf16.xpose.msra.mxu0 0
        %480 = vmatprep.subr.bf16.mxu0 0
        %481 = vmatpush1.bf16.xpose.msra.mxu0 0
        %482 = vmatprep.subr.bf16.mxu0 0
        %483 = vmatpush1.bf16.xpose.msra.mxu0 0
        %484 = vmatprep.mubr.bf16.mxu0 0
        %485 = vmatmul.mubr.bf16.gmra.mrb[0].mxu0 %v405
        %v486 = vpop.f32.mrb[0].mxu0
        %v487 = vadd.f32 %v286, %v486
        %v488 = vpop.f32.mrb[0].mxu0
        %v489 = vpop.f32.mrb[0].mxu0
        %v490 = vadd.f32 %v291, %v489
        %v491 = vpop.f32.mrb[0].mxu0
        %492 = vmatprep.mubr.bf16.mxu0 0
        %493 = vmatmul.mubr.bf16.gmra.mrb[0].mxu0 %v408
        %v494 = vpop.f32.mrb[0].mxu0
        %v495 = vadd.f32 %v296, %v494
        %v496 = vpop.f32.mrb[0].mxu0
        %v497 = vpop.f32.mrb[0].mxu0
        %v498 = vadd.f32 %v301, %v497
        %v499 = vpop.f32.mrb[0].mxu0
        %500 = vmatprep.mubr.bf16.mxu0 0
        %501 = vmatmul.mubr.bf16.gmra.mrb[0].mxu0 %v411
        %v502 = vpop.f32.mrb[0].mxu0
        %v503 = vadd.f32 %v306, %v502
        %v504 = vpop.f32.mrb[0].mxu0
        %v505 = vpop.f32.mrb[0].mxu0
        %v506 = vadd.f32 %v311, %v505
        %v507 = vpop.f32.mrb[0].mxu0
        %508 = vmatprep.mubr.bf16.mxu0 0
        %509 = vmatmul.mubr.bf16.gmra.mrb[0].mxu0 %v414
        %v510 = vpop.f32.mrb[0].mxu0
        %v511 = vadd.f32 %v316, %v510
        %v512 = vpop.f32.mrb[0].mxu0
        %v513 = vpop.f32.mrb[0].mxu0
        %v514 = vadd.f32 %v321, %v513
        %v515 = vpop.f32.mrb[0].mxu0
        %516 = vmatprep.mubr.bf16.mxu0 0
        %517 = vmatmul.mubr.bf16.gmra.mrb[0].mxu0 %v417
        %v518 = vpop.f32.mrb[0].mxu0
        %v519 = vadd.f32 %v326, %v518
        %v520 = vpop.f32.mrb[0].mxu0
        %v521 = vpop.f32.mrb[0].mxu0
        %v522 = vadd.f32 %v331, %v521
        %v523 = vpop.f32.mrb[0].mxu0
        %524 = vmatprep.mubr.bf16.mxu0 0
        %525 = vmatmul.mubr.bf16.gmra.mrb[0].mxu0 %v420
        %v526 = vpop.f32.mrb[0].mxu0
        %v527 = vadd.f32 %v336, %v526
        %v528 = vpop.f32.mrb[0].mxu0
        %v529 = vpop.f32.mrb[0].mxu0
        %v530 = vadd.f32 %v341, %v529
        %v531 = vpop.f32.mrb[0].mxu0
        %532 = vmatprep.mubr.bf16.mxu0 0
        %533 = vmatmul.mubr.bf16.gmra.mrb[0].mxu0 %v423
        %v534 = vpop.f32.mrb[0].mxu0
        %v535 = vadd.f32 %v346, %v534
        %v536 = vpop.f32.mrb[0].mxu0
        %v537 = vpop.f32.mrb[0].mxu0
        %v538 = vadd.f32 %v351, %v537
        %v539 = vpop.f32.mrb[0].mxu0
        %540 = vmatprep.mubr.bf16.mxu0 0
        %541 = vmatmul.mubr.bf16.gmra.mrb[0].mxu0 %v426
        %v542 = vpop.f32.mrb[0].mxu0
        %v543 = vadd.f32 %v356, %v542
        %v544 = vpop.f32.mrb[0].mxu0
        %v545 = vpop.f32.mrb[0].mxu0
        %v546 = vadd.f32 %v361, %v545
        %v547 = vpop.f32.mrb[0].mxu0
        %548 = vdwg.mxu0
        %v549 = vmax.f32 %v487, 0.0
        %v550 = vmax.f32 %v490, 0.0
        %v551 = vmax.f32 %v495, 0.0
        %v552 = vmax.f32 %v498, 0.0
        %v553 = vmax.f32 %v503, 0.0
        %v554 = vmax.f32 %v506, 0.0
        %v555 = vmax.f32 %v511, 0.0
        %v556 = vmax.f32 %v514, 0.0
        %v557 = vmax.f32 %v519, 0.0
        %v558 = vmax.f32 %v522, 0.0
        %v559 = vmax.f32 %v527, 0.0
        %v560 = vmax.f32 %v530, 0.0
        %v561 = vmax.f32 %v535, 0.0
        %v562 = vmax.f32 %v538, 0.0
        %v563 = vmax.f32 %v543, 0.0
        %v564 = vmax.f32 %v546, 0.0
        %v565 = vld [vmem:[%s2] sm:$0xf]
        %v566 = vld [vmem:[%s2 + $0x4] sm:$0xf]
        %v567 = vld [vmem:[%s2 + $0x8] sm:$0xf]
        %v568 = vld [vmem:[%s2 + $0xc] sm:$0xf]
        %v569 = vld [vmem:[%s2 + $0x10] sm:$0xf]
        %v570 = vld [vmem:[%s2 + $0x14] sm:$0xf]
        %v571 = vld [vmem:[%s2 + $0x18] sm:$0xf]
        %v572 = vld [vmem:[%s2 + $0x1c] sm:$0xf]
        %v573 = vld [vmem:[%s2 + $0x20] sm:$0xf]
        %v574 = vld [vmem:[%s2 + $0x24] sm:$0xf]
        %v575 = vld [vmem:[%s2 + $0x28] sm:$0xf]
        %v576 = vld [vmem:[%s2 + $0x2c] sm:$0xf]
        %v577 = vld [vmem:[%s2 + $0x30] sm:$0xf]
        %v578 = vld [vmem:[%s2 + $0x34] sm:$0xf]
        %v579 = vld [vmem:[%s2 + $0x38] sm:$0xf]
        %v580 = vld [vmem:[%s2 + $0x3c] sm:$0xf]
        %v581 = vpack.c.bf16 %v550, %v549
        %v582 = vpack.c.bf16 %v552, %v551
        %v583 = vpack.c.bf16 %v554, %v553
        %v584 = vpack.c.bf16 %v556, %v555
        %v585 = vpack.c.bf16 %v558, %v557
        %v586 = vpack.c.bf16 %v560, %v559
        %v587 = vpack.c.bf16 %v562, %v561
        %v588 = vpack.c.bf16 %v564, %v563
        %589 = vset.pattern.permute.xlu0 1
        %590 = vperm.xlu0 %589, %v251
        %v591 = vpop.permute.xlu0 %590
        %593 = vset.pattern.permute.xlu0 1
        %594 = vperm.xlu0 %593, %v252
        %v595 = vpop.permute.xlu0 %594
        %597 = vset.pattern.permute.xlu0 1
        %598 = vperm.xlu0 %597, %v253
        %v599 = vpop.permute.xlu0 %598
        %601 = vset.pattern.permute.xlu0 1
        %602 = vperm.xlu0 %601, %v254
        %v603 = vpop.permute.xlu0 %602
        %605 = vset.pattern.permute.xlu0 1
        %606 = vperm.xlu0 %605, %v255
        %v607 = vpop.permute.xlu0 %606
        %609 = vset.pattern.permute.xlu0 1
        %610 = vperm.xlu0 %609, %v256
        %v611 = vpop.permute.xlu0 %610
        %613 = vset.pattern.permute.xlu0 1
        %614 = vperm.xlu0 %613, %v257
        %v615 = vpop.permute.xlu0 %614
        %617 = vset.pattern.permute.xlu0 1
        %618 = vperm.xlu0 %617, %v258
        %v619 = vpop.permute.xlu0 %618
        %621 = vset.pattern.permute.xlu0 1
        %622 = vperm.xlu0 %621, %v259
        %v623 = vpop.permute.xlu0 %622
        %625 = vset.pattern.permute.xlu0 1
        %626 = vperm.xlu0 %625, %v260
        %v627 = vpop.permute.xlu0 %626
        %629 = vset.pattern.permute.xlu0 1
        %630 = vperm.xlu0 %629, %v261
        %v631 = vpop.permute.xlu0 %630
        %633 = vset.pattern.permute.xlu0 1
        %634 = vperm.xlu0 %633, %v262
        %v635 = vpop.permute.xlu0 %634
        %637 = vset.pattern.permute.xlu0 1
        %638 = vperm.xlu0 %637, %v263
        %v639 = vpop.permute.xlu0 %638
        %641 = vset.pattern.permute.xlu0 1
        %642 = vperm.xlu0 %641, %v264
        %v643 = vpop.permute.xlu0 %642
        %645 = vset.pattern.permute.xlu0 1
        %646 = vperm.xlu0 %645, %v265
        %v647 = vpop.permute.xlu0 %646
        %649 = vset.pattern.permute.xlu0 1
        %650 = vperm.xlu0 %649, %v266
        %v651 = vpop.permute.xlu0 %650
        %v669 = vunpack.c.l.b16 %v565
        %v670 = vunpack.c.l.b16 %v566
        %v671 = vunpack.c.l.b16 %v567
        %v672 = vunpack.c.l.b16 %v568
        %v673 = vunpack.c.l.b16 %v569
        %v674 = vunpack.c.l.b16 %v570
        %v675 = vunpack.c.l.b16 %v571
        %v676 = vunpack.c.l.b16 %v572
        %v677 = vunpack.c.l.b16 %v573
        %v678 = vunpack.c.l.b16 %v574
        %v679 = vunpack.c.l.b16 %v575
        %v680 = vunpack.c.l.b16 %v576
        %v681 = vunpack.c.l.b16 %v577
        %v682 = vunpack.c.l.b16 %v578
        %v683 = vunpack.c.l.b16 %v579
        %v684 = vunpack.c.l.b16 %v580
        %v685 = vpack.c.b16 %v670, %v669
        %v686 = vpack.c.b16 %v672, %v671
        %v687 = vpack.c.b16 %v674, %v673
        %v688 = vpack.c.b16 %v676, %v675
        %v689 = vpack.c.b16 %v678, %v677
        %v690 = vpack.c.b16 %v680, %v679
        %v691 = vpack.c.b16 %v682, %v681
        %v692 = vpack.c.b16 %v684, %v683
        %701 = vmatprep.subr.bf16.mxu0 0
        %702 = vmatpush1.bf16.msra.mxu0 %v581
        %703 = vmatprep.subr.bf16.mxu0 0
        %704 = vmatpush1.bf16.msra.mxu0 %v582
        %705 = vmatprep.subr.bf16.mxu0 0
        %706 = vmatpush1.bf16.msra.mxu0 %v583
        %707 = vmatprep.subr.bf16.mxu0 0
        %708 = vmatpush1.bf16.msra.mxu0 %v584
        %709 = vmatprep.subr.bf16.mxu0 0
        %710 = vmatpush1.bf16.msra.mxu0 %v585
        %711 = vmatprep.subr.bf16.mxu0 0
        %712 = vmatpush1.bf16.msra.mxu0 %v586
        %713 = vmatprep.subr.bf16.mxu0 0
        %714 = vmatpush1.bf16.msra.mxu0 %v587
        %715 = vmatprep.subr.bf16.mxu0 0
        %716 = vmatpush1.bf16.msra.mxu0 %v588
        %717 = vmatprep.subr.bf16.mxu0 0
        %718 = vmatpush1.bf16.msra.mxu0 0
        %719 = vmatprep.subr.bf16.mxu0 0
        %720 = vmatpush1.bf16.msra.mxu0 0
        %721 = vmatprep.subr.bf16.mxu0 0
        %722 = vmatpush1.bf16.msra.mxu0 0
        %723 = vmatprep.subr.bf16.mxu0 0
        %724 = vmatpush1.bf16.msra.mxu0 0
        %725 = vmatprep.subr.bf16.mxu0 0
        %726 = vmatpush1.bf16.msra.mxu0 0
        %727 = vmatprep.subr.bf16.mxu0 0
        %728 = vmatpush1.bf16.msra.mxu0 0
        %729 = vmatprep.subr.bf16.mxu0 0
        %730 = vmatpush1.bf16.msra.mxu0 0
        %731 = vmatprep.subr.bf16.mxu0 0
        %732 = vmatpush1.bf16.msra.mxu0 0
        %733 = vmatprep.mubr.bf16.mxu0 0
        %734 = vmatmul.mubr.bf16.gmra.mrb[0].mxu0 %v685
        %v735 = vpop.f32.mrb[0].mxu0
        %v736 = vadd.f32 %v591, %v735
        %v737 = vpop.f32.mrb[0].mxu0
        %v738 = vpop.f32.mrb[0].mxu0
        %v739 = vadd.f32 %v595, %v738
        %v740 = vpop.f32.mrb[0].mxu0
        %741 = vmatprep.mubr.bf16.mxu0 0
        %742 = vmatmul.mubr.bf16.gmra.mrb[0].mxu0 %v686
        %v743 = vpop.f32.mrb[0].mxu0
        %v744 = vadd.f32 %v599, %v743
        %v745 = vpop.f32.mrb[0].mxu0
        %v746 = vpop.f32.mrb[0].mxu0
        %v747 = vadd.f32 %v603, %v746
        %v748 = vpop.f32.mrb[0].mxu0
        %749 = vmatprep.mubr.bf16.mxu0 0
        %750 = vmatmul.mubr.bf16.gmra.mrb[0].mxu0 %v687
        %v751 = vpop.f32.mrb[0].mxu0
        %v752 = vadd.f32 %v607, %v751
        %v753 = vpop.f32.mrb[0].mxu0
        %v754 = vpop.f32.mrb[0].mxu0
        %v755 = vadd.f32 %v611, %v754
        %v756 = vpop.f32.mrb[0].mxu0
        %757 = vmatprep.mubr.bf16.mxu0 0
        %758 = vmatmul.mubr.bf16.gmra.mrb[0].mxu0 %v688
        %v759 = vpop.f32.mrb[0].mxu0
        %v760 = vadd.f32 %v615, %v759
        %v761 = vpop.f32.mrb[0].mxu0
        %v762 = vpop.f32.mrb[0].mxu0
        %v763 = vadd.f32 %v619, %v762
        %v764 = vpop.f32.mrb[0].mxu0
        %765 = vmatprep.mubr.bf16.mxu0 0
        %766 = vmatmul.mubr.bf16.gmra.mrb[0].mxu0 %v689
        %v767 = vpop.f32.mrb[0].mxu0
        %v768 = vadd.f32 %v623, %v767
        %v769 = vpop.f32.mrb[0].mxu0
        %v770 = vpop.f32.mrb[0].mxu0
        %v771 = vadd.f32 %v627, %v770
        %v772 = vpop.f32.mrb[0].mxu0
        %773 = vmatprep.mubr.bf16.mxu0 0
        %774 = vmatmul.mubr.bf16.gmra.mrb[0].mxu0 %v690
        %v775 = vpop.f32.mrb[0].mxu0
        %v776 = vadd.f32 %v631, %v775
        %v777 = vpop.f32.mrb[0].mxu0
        %v778 = vpop.f32.mrb[0].mxu0
        %v779 = vadd.f32 %v635, %v778
        %v780 = vpop.f32.mrb[0].mxu0
        %781 = vmatprep.mubr.bf16.mxu0 0
        %782 = vmatmul.mubr.bf16.gmra.mrb[0].mxu0 %v691
        %v783 = vpop.f32.mrb[0].mxu0
        %v784 = vadd.f32 %v639, %v783
        %v785 = vpop.f32.mrb[0].mxu0
        %v786 = vpop.f32.mrb[0].mxu0
        %v787 = vadd.f32 %v643, %v786
        %v788 = vpop.f32.mrb[0].mxu0
        %789 = vmatprep.mubr.bf16.mxu0 0
        %790 = vmatmul.mubr.bf16.gmra.mrb[0].mxu0 %v692
        %v791 = vpop.f32.mrb[0].mxu0
        %v792 = vadd.f32 %v647, %v791
        %v793 = vpop.f32.mrb[0].mxu0
        %v794 = vpop.f32.mrb[0].mxu0
        %v795 = vadd.f32 %v651, %v794
        %v796 = vpop.f32.mrb[0].mxu0
        %797 = vdwg.mxu0
        %v798 = vmax.f32 %v736, 0.0
        %v799 = vmax.f32 %v739, 0.0
        %v800 = vmax.f32 %v744, 0.0
        %v801 = vmax.f32 %v747, 0.0
        %v802 = vmax.f32 %v752, 0.0
        %v803 = vmax.f32 %v755, 0.0
        %v804 = vmax.f32 %v760, 0.0
        %v805 = vmax.f32 %v763, 0.0
        %v806 = vmax.f32 %v768, 0.0
        %v807 = vmax.f32 %v771, 0.0
        %v808 = vmax.f32 %v776, 0.0
        %v809 = vmax.f32 %v779, 0.0
        %v810 = vmax.f32 %v784, 0.0
        %v811 = vmax.f32 %v787, 0.0
        %v812 = vmax.f32 %v792, 0.0
        %v813 = vmax.f32 %v795, 0.0
        %814 = vset.pattern.permute.xlu0 2
        %815 = vperm.xlu0 %814, %v251
        %v816 = vpop.permute.xlu0 %815
        %818 = vset.pattern.permute.xlu0 2
        %819 = vperm.xlu0 %818, %v252
        %v820 = vpop.permute.xlu0 %819
        %822 = vset.pattern.permute.xlu0 2
        %823 = vperm.xlu0 %822, %v253
        %v824 = vpop.permute.xlu0 %823
        %826 = vset.pattern.permute.xlu0 2
        %827 = vperm.xlu0 %826, %v254
        %v828 = vpop.permute.xlu0 %827
        %830 = vset.pattern.permute.xlu0 2
        %831 = vperm.xlu0 %830, %v255
        %v832 = vpop.permute.xlu0 %831
        %834 = vset.pattern.permute.xlu0 2
        %835 = vperm.xlu0 %834, %v256
        %v836 = vpop.permute.xlu0 %835
        %838 = vset.pattern.permute.xlu0 2
        %839 = vperm.xlu0 %838, %v257
        %v840 = vpop.permute.xlu0 %839
        %842 = vset.pattern.permute.xlu0 2
        %843 = vperm.xlu0 %842, %v258
        %v844 = vpop.permute.xlu0 %843
        %846 = vset.pattern.permute.xlu0 2
        %847 = vperm.xlu0 %846, %v259
        %v848 = vpop.permute.xlu0 %847
        %850 = vset.pattern.permute.xlu0 2
        %851 = vperm.xlu0 %850, %v260
        %v852 = vpop.permute.xlu0 %851
        %854 = vset.pattern.permute.xlu0 2
        %855 = vperm.xlu0 %854, %v261
        %v856 = vpop.permute.xlu0 %855
        %858 = vset.pattern.permute.xlu0 2
        %859 = vperm.xlu0 %858, %v262
        %v860 = vpop.permute.xlu0 %859
        %862 = vset.pattern.permute.xlu0 2
        %863 = vperm.xlu0 %862, %v263
        %v864 = vpop.permute.xlu0 %863
        %866 = vset.pattern.permute.xlu0 2
        %867 = vperm.xlu0 %866, %v264
        %v868 = vpop.permute.xlu0 %867
        %870 = vset.pattern.permute.xlu0 2
        %871 = vperm.xlu0 %870, %v265
        %v872 = vpop.permute.xlu0 %871
        %874 = vset.pattern.permute.xlu0 2
        %875 = vperm.xlu0 %874, %v266
        %v876 = vpop.permute.xlu0 %875
        %v878 = vmul.f32 %v798, %v816
        %v879 = vmul.f32 %v799, %v820
        %v880 = vmul.f32 %v800, %v824
        %v881 = vmul.f32 %v801, %v828
        %v882 = vmul.f32 %v802, %v832
        %v883 = vmul.f32 %v803, %v836
        %v884 = vmul.f32 %v804, %v840
        %v885 = vmul.f32 %v805, %v844
        %v886 = vmul.f32 %v806, %v848
        %v887 = vmul.f32 %v807, %v852
        %v888 = vmul.f32 %v808, %v856
        %v889 = vmul.f32 %v809, %v860
        %v890 = vmul.f32 %v810, %v864
        %v891 = vmul.f32 %v811, %v868
        %v892 = vmul.f32 %v812, %v872
        %v893 = vmul.f32 %v813, %v876
        %v894 = vadd.f32 %v878, %v879
        %v895 = vadd.f32 %v894, %v880
        %v896 = vadd.f32 %v895, %v881
        %v897 = vadd.f32 %v896, %v882
        %v898 = vadd.f32 %v897, %v883
        %v899 = vadd.f32 %v898, %v884
        %v900 = vadd.f32 %v899, %v885
        %v901 = vadd.f32 %v900, %v886
        %v902 = vadd.f32 %v901, %v887
        %v903 = vadd.f32 %v902, %v888
        %v904 = vadd.f32 %v903, %v889
        %v905 = vadd.f32 %v904, %v890
        %v906 = vadd.f32 %v905, %v891
        %v907 = vadd.f32 %v906, %v892
        %v908 = vadd.f32 %v907, %v893
        %v909 = vrot.slane %v908, 4
        %v910 = vadd.f32 %v908, %v909
        %v911 = vrot.slane %v910, 2
        %v912 = vadd.f32 %v910, %v911
        %v913 = vrot.slane %v912, 1
        %v914 = vadd.f32 %v912, %v913
        %v915 = vld [vmem:[#allocation2] sm:$0x1]
        %917 = vset.pattern.permute.xlu0 0
        %918 = vperm.xlu0 %917, %v915
        %v919 = vpop.permute.xlu0 %918
        %v921 = vlaneseq
        %v922 = vshrl.u32 %v921, 7
        %v923 = vsub.s32 0, %v922
        %v924 = vrot.slane %v919, %v923
        %v925 = vadd.f32 %v914, %v924
        %926 = vst [vmem:[%s219] sm:$0x1] %v925
        %s927 = sand.u32 %s139, 1
        %s928 = scalar_lea.sflag [#allocation4], %s927
        %s929 = sand.u32 %s139, 1
        %s930 = scalar_lea.vmem [#allocation3], %s929
        // Predicated region
        $region41: #{regression_forward.1} parent=39 // pred_check
          %p931 = pneg %p149
        $region42: #{regression_forward.1} parent=39 // pred_check_branch
          %933 = sbr.rel (%p931) target = $region44
        $region43: #{regression_forward.1} parent=39 // pred_region
          %s935 = ssub.s32 16, 16
          %936 = vsyncadd %s928, %s935
          %s937 = smul.addr %s21, 16
          %s938 = scalar_lea.hbm %s5, %s937
          %s940 = sshll.u32 %s930, 4
          %s941 = int_to_ptr.vmem [resolvable:$true] %s940
          %943 = dma.vmem_to_hbm [thread:$0]  %s941, 16, %s938, %s928
        $region44: #{regression_forward.1} parent=39 // pred_fallthru
          _
      $region40: #{regression_forward.1} parent=5 // pred_fallthru
        _
      %p944 = scmp.le.s32.totalorder 2, %s16
      // Predicated region
      $region45: #{regression_forward.1} parent=5 // pred_check
        %p945 = pneg %p944
      $region46: #{regression_forward.1} parent=5 // pred_check_branch
        %947 = sbr.rel (%p945) target = $region48
      $region47: #{regression_forward.1} parent=5 // pred_region
        %s948 = ssub.s32 %s16, 2
        // Predicated region
        $region49: #{regression_forward.1} parent=47 // pred_check
          %p949 = pneg %p155
        $region50: #{regression_forward.1} parent=47 // pred_check_branch
          %951 = sbr.rel (%p949) target = $region52
        $region51: #{regression_forward.1} parent=47 // pred_region
          %s952 = sand.u32 %s140, 1
          %s953 = scalar_lea.sflag [#allocation4], %s952
          %s954 = sand.u32 %s140, 1
          %s955 = scalar_lea.vmem [#allocation3], %s954
          %956 = dma.done %s953, 16
        $region52: #{regression_forward.1} parent=47 // pred_fallthru
          _
      $region48: #{regression_forward.1} parent=5 // pred_fallthru
        _
    $region6: #{regression_forward.1} parent=1 // loop_footer
      %s20 = sadd.s32 1, %s16
    $region7: #{regression_forward.1} parent=1 // loop_footer_branch
      %15 = sbr.rel target = $region3
    $region8: #{regression_forward.1} parent=1 // loop_exit
      _
    %957 = vsyncpa [#allocation4], 1
    %s958 = scalar_lea.sflag [#allocation4], 1
    %959 = vsyncpa %s958, 1

</llo_original>
